<compile_context>
chip_gen: v7x
topology: tpu7x:2x2x1
jax: 0.10.0
libtpu: 0.0.40
codegen_flags: <defaults>
</compile_context>

<pallas_src>
import functools

import jax
import jax.numpy as jnp
from jax import lax
from jax.experimental import pallas as pl
from jax.experimental.pallas import tpu as pltpu

D = 2048  # hidden size fixed by the module definition


def _linear_kernel(x_ref, w_ref, o_ref):
    # x_ref: (M, K) activations, resident for the whole grid (constant index map).
    # w_ref: (tn, K) row-slice of the PyTorch-layout [out, in] weight.
    # o_ref: (M, tn) output block.  One full-K contraction -> no accumulator.
    o_ref[...] = lax.dot_general(
        x_ref[...],
        w_ref[...],
        dimension_numbers=(((1,), (1,)), ((), ())),  # x @ w.T without transposing w
        preferred_element_type=jnp.float32,
    ).astype(o_ref.dtype)


@functools.partial(jax.jit, static_argnames=("tn",))
def pallas_linear(x, w, *, tn=512):
    """y = x @ w.T with w kept in PyTorch [out_features, in_features] layout."""
    M, K = x.shape
    N, K2 = w.shape
    assert K == K2, (K, K2)
    assert N % tn == 0, (N, tn)  # no remainder handling; true for D=2048, tn=512
    grid = (N // tn,)
    return pl.pallas_call(
        _linear_kernel,
        out_shape=jax.ShapeDtypeStruct((M, N), x.dtype),
        grid_spec=pltpu.PrefetchScalarGridSpec(
            num_scalar_prefetch=0,
            grid=grid,
            in_specs=[
                pl.BlockSpec((M, K), lambda j: (0, 0)),   # activations: fetched once
                pl.BlockSpec((tn, K), lambda j: (j, 0)),  # weight rows j*tn:(j+1)*tn
            ],
            out_specs=pl.BlockSpec((M, tn), lambda j: (0, j)),  # lane-dense (512)
        ),
        compiler_params=pltpu.CompilerParams(
            # Single grid axis over N; blocks are independent -> parallel, so
            # v7x's two TensorCores each stream half of the weights.
            dimension_semantics=("parallel",),
        ),
        cost_estimate=pl.CostEstimate(
            flops=2 * M * N * K,
            transcendentals=0,
            bytes_accessed=(M * K + N * K + M * N) * x.dtype.itemsize,
        ),
    )(x, w)


@jax.jit
def toy_model_forward(x, w1, w2, w3):
    """ToyModel.forward: x -> fc1 -> fc2 -> fc3 (no bias), weights in [out, in]."""
    # TODO(synk): torch.cuda.memory_allocated() debug prints have no Pallas/TPU
    # equivalent and are omitted (they do not affect the returned value).
    x = pallas_linear(x, w1)
    x = pallas_linear(x, w2)
    x = pallas_linear(x, w3)
    return x


if __name__ == "__main__":
    key = jax.random.PRNGKey(0)
    kx, k1, k2, k3 = jax.random.split(key, 4)

    batch = 8  # small batch; hidden size is fixed at 2048 by the module
    x = jax.random.normal(kx, (batch, D), dtype=jnp.float32)
    # Deterministic weight init, PyTorch layout [out_features, in_features],
    # scaled like the Kaiming-uniform bound 1/sqrt(fan_in) for sane magnitudes.
    bound = 1.0 / jnp.sqrt(D)
    w1 = jax.random.uniform(k1, (D, D), jnp.float32, -bound, bound)
    w2 = jax.random.uniform(k2, (D, D), jnp.float32, -bound, bound)
    w3 = jax.random.uniform(k3, (D, D), jnp.float32, -bound, bound)

    out = toy_model_forward(x, w1, w2, w3)
    out = jax.block_until_ready(out)

    # Sanity check against a plain JAX reference (same math: x @ W.T per layer).
    ref = x @ w1.T @ w2.T @ w3.T
    assert out.shape == (batch, D)
    assert jnp.allclose(out, ref, rtol=1e-3, atol=1e-3), float(
        jnp.max(jnp.abs(out - ref))
    )

    print("KERNEL_OK")
</pallas_src>

<mosaic_0001>
module attributes {stable_mosaic.version = 11 : i64} {
  func.func @_linear_kernel(%arg0: i32, %arg1: memref<8x2048xf32, #tpu.memory_space<vmem>>, %arg2: memref<512x2048xf32, #tpu.memory_space<vmem>>, %arg3: memref<8x512xf32, #tpu.memory_space<vmem>>) attributes {dimension_semantics = [#tpu.dimension_semantics<parallel>], iteration_bounds = array<i64: 4>, scalar_prefetch = 0 : i64, scratch_operands = 0 : i64, tpu.core_type = #tpu.core_type<tc>, window_params = [{pipeline_mode = #tpu.pipeline_mode<synchronous>, transform_indices = @transform_0, window_bounds = array<i64: 8, 2048>}, {transform_indices = @transform_1, window_bounds = array<i64: 512, 2048>}, {transform_indices = @transform_2, window_bounds = array<i64: 8, 512>}]} {
    %c0 = arith.constant 0 : index
    %c0_0 = arith.constant 0 : index
    %0 = vector.load %arg1[%c0, %c0_0] : memref<8x2048xf32, #tpu.memory_space<vmem>>, vector<8x2048xf32>
    %c0_1 = arith.constant 0 : index
    %c0_2 = arith.constant 0 : index
    %1 = vector.load %arg2[%c0_1, %c0_2] : memref<512x2048xf32, #tpu.memory_space<vmem>>, vector<512x2048xf32>
    %cst = arith.constant dense<0.000000e+00> : vector<8x512xf32>
    %2 = tpu.matmul %0, %1, %cst {dimension_numbers = #tpu.dot_dimension_numbers<[1], [1], [0], [0], [0, 0, 1, 0], [], []>} : vector<8x2048xf32>, vector<512x2048xf32>, vector<8x512xf32> -> vector<8x512xf32>
    %c0_3 = arith.constant 0 : index
    %c0_4 = arith.constant 0 : index
    %3 = vector.load %arg3[%c0_3, %c0_4] : memref<8x512xf32, #tpu.memory_space<vmem>>, vector<8x512xf32>
    tpu.vector_store %arg3[%c0_3, %c0_4], %2 {strides = array<i32>} : memref<8x512xf32, #tpu.memory_space<vmem>>, vector<8x512xf32>,
    return
  }
  func.func @transform_0(%arg0: i32) -> (i32, i32) {
    %c0_i32 = arith.constant 0 : i32
    %c0_i32_0 = arith.constant 0 : i32
    %c0_i32_1 = arith.constant 0 : i32
    return %c0_i32, %c0_i32_0 : i32, i32
  }
  func.func @transform_1(%arg0: i32) -> (i32, i32) {
    %c0_i32 = arith.constant 0 : i32
    %c0_i32_0 = arith.constant 0 : i32
    return %arg0, %c0_i32 : i32, i32
  }
  func.func @transform_2(%arg0: i32) -> (i32, i32) {
    %c0_i32 = arith.constant 0 : i32
    %c0_i32_0 = arith.constant 0 : i32
    return %c0_i32, %arg0 : i32, i32
  }
}

</mosaic_0001>

<llo_original>
// kernel: pallas_linear.1
$region0: #{pallas_linear.1}
  #allocation0 [shape = 'u32[]', space=smem, size = 0x4, offset = 0x4, fixed_abs, tag = 'smem constant byte address 0x4 - core index']
  #allocation1 [shape = 'u32[144,128]{1,0:T(1,128)}', space=vmem, size = 0x12000, scoped, tag = 'internal scratch']
  %s0 = inlined_call_operand.hbm [shape: f32[8,2048], index: 0, kind: input, shape index: {}]
  %s1 = inlined_call_operand.hbm [shape: f32[2048,2048], index: 1, kind: input, shape index: {}]
  %s2 = inlined_call_operand.hbm [shape: f32[8,2048], index: 2, kind: output, shape index: {}]
  %s3 = sld [smem:[#allocation0]]
  $region49: #{pallas_linear.1} parent=0
    _
  %s5 = ssub.s32 1, %s3
  %s6 = scalar_select 0, %s5, %s3
  $region1: #{pallas_linear.1} parent=0
    #allocation2 [shape = 'u8[65536]{0}', space=vmem, size = 0x10000, scoped, tag = 'input window, operand 0, single buffered']
    #allocation3 [shape = 's32[2]{0}', space=sflag, size = 0x8, scoped, tag = 'scoped memory for pallas_linear.1']
    #allocation4 [shape = 's32[2]{0}', space=sflag, size = 0x8, scoped, tag = 'scoped memory for pallas_linear.1']
    #allocation5 [shape = 'u8[8388608]{0}', space=vmem, size = 0x800000, scoped, tag = 'input window, operand 1']
    #allocation6 [shape = 's32[2]{0}', space=sflag, size = 0x8, scoped, tag = 'scoped memory for pallas_linear.1']
    #allocation7 [shape = 'u8[32768]{0}', space=vmem, size = 0x8000, scoped, tag = 'output window, operand 0']
    %7 = vsyncpa [#allocation3], 0
    %8 = vsyncpa [#allocation6], 0
    %s9 = scalar_lea.sflag [#allocation6], 1
    %10 = vsyncpa %s9, 0
    %11 = vsyncpa [#allocation4], 0
    %s12 = scalar_lea.sflag [#allocation4], 1
    %13 = vsyncpa %s12, 0
    loop: start=0, step=1, limit=6
    $region2: #{pallas_linear.1} parent=1 // loop_pre_header
      _
    $region3: #{pallas_linear.1} parent=1 // loop_header
      %s15 = sphi 0, %s19
      %p16 = scmp.ge.s32.totalorder %s15, 6
      %s23 = sphi 0, %s23
      %s25 = sphi 0, %s23
      %s26 = sphi 0, %s25
      %s40 = sphi 0, %s26
      %s46 = sphi 0, %s48
      %s49 = sphi 0, %s46
      %s50 = sphi 0, %s49
      %s66 = sphi 0, %s50
      %s72 = sphi 0, %s74
      %s75 = sphi 0, %s72
      %s76 = sphi 0, %s75
      %s92 = sphi 0, %s76
    $region4: #{pallas_linear.1} parent=1 // loop_header_branch
      %18 = sbr.rel (%p16) target = $region8
    $region5: #{pallas_linear.1} parent=1 // loop_body
      %s20 = ssub.s32 %s15, 1
      %s21 = ssub.s32 %s15, 2
      %s22 = sadd.s32 %s15, 1
      %s24 = sadd.s32 %s23, 1
      %p27 = scmp.eq.s32.totalorder %s15, 3
      %p28 = scmp.ne.s32.totalorder %s23, %s25
      %p29 = scmp.eq.s32.totalorder %s15, 0
      %p30 = por %p28, %p29
      %p31 = scmp.ne.s32.totalorder %s23, %s25
      %p32 = scmp.eq.s32.totalorder %s20, 3
      %p33 = por %p31, %p32
      %p34 = scmp.ne.s32.totalorder %s25, %s26
      %p35 = scmp.eq.s32.totalorder %s20, 0
      %p36 = por %p34, %p35
      %p37 = scmp.ne.s32.totalorder %s25, %s26
      %p38 = scmp.eq.s32.totalorder %s21, 3
      %p39 = por %p37, %p38
      %p41 = scmp.ne.s32.totalorder %s26, %s40
      %p42 = scmp.eq.s32.totalorder %s21, 0
      %p43 = por %p41, %p42
      %s44 = ssub.s32 %s15, %s22
      %p45 = scmp.eq.s32.totalorder %s44, 0
      %s47 = sadd.s32 %s46, 1
      %s48 = scalar_select %p45, %s46, %s47
      %p51 = pneg %p45
      %p52 = scmp.eq.s32.totalorder %s15, 3
      %p53 = por %p51, %p52
      %p54 = scmp.ne.s32.totalorder %s46, %s49
      %p55 = scmp.eq.s32.totalorder %s15, 0
      %p56 = por %p54, %p55
      %p57 = scmp.ne.s32.totalorder %s46, %s49
      %p58 = scmp.eq.s32.totalorder %s20, 3
      %p59 = por %p57, %p58
      %p60 = scmp.ne.s32.totalorder %s49, %s50
      %p61 = scmp.eq.s32.totalorder %s20, 0
      %p62 = por %p60, %p61
      %p63 = scmp.ne.s32.totalorder %s49, %s50
      %p64 = scmp.eq.s32.totalorder %s21, 3
      %p65 = por %p63, %p64
      %p67 = scmp.ne.s32.totalorder %s50, %s66
      %p68 = scmp.eq.s32.totalorder %s21, 0
      %p69 = por %p67, %p68
      %s70 = ssub.s32 %s15, %s22
      %p71 = scmp.eq.s32.totalorder %s70, 0
      %s73 = sadd.s32 %s72, 1
      %s74 = scalar_select %p71, %s72, %s73
      %p77 = pneg %p71
      %p78 = scmp.eq.s32.totalorder %s15, 3
      %p79 = por %p77, %p78
      %p80 = scmp.ne.s32.totalorder %s72, %s75
      %p81 = scmp.eq.s32.totalorder %s15, 0
      %p82 = por %p80, %p81
      %p83 = scmp.ne.s32.totalorder %s72, %s75
      %p84 = scmp.eq.s32.totalorder %s20, 3
      %p85 = por %p83, %p84
      %p86 = scmp.ne.s32.totalorder %s75, %s76
      %p87 = scmp.eq.s32.totalorder %s20, 0
      %p88 = por %p86, %p87
      %p89 = scmp.ne.s32.totalorder %s75, %s76
      %p90 = scmp.eq.s32.totalorder %s21, 3
      %p91 = por %p89, %p90
      %p93 = scmp.ne.s32.totalorder %s76, %s92
      %p94 = scmp.eq.s32.totalorder %s21, 0
      %p95 = por %p93, %p94
      %p96 = scmp.le.s32.totalorder 1, %s15
      %p97 = scmp.lt.s32.totalorder %s15, 5
      %p98 = pnand %p96, %p97
      %p99 = pneg %p98
      // Predicated region
      $region9: #{pallas_linear.1} parent=5 // pred_check
        _
      $region10: #{pallas_linear.1} parent=5 // pred_check_branch
        %101 = sbr.rel (%p98) target = $region12
      $region11: #{pallas_linear.1} parent=5 // pred_region
        %s102 = ssub.s32 %s15, 1
        // Predicated region
        $region13: #{pallas_linear.1} parent=11 // pred_check
          %p103 = pneg %p36
        $region14: #{pallas_linear.1} parent=11 // pred_check_branch
          %105 = sbr.rel (%p103) target = $region16
        $region15: #{pallas_linear.1} parent=11 // pred_region
          %s107 = ssub.s32 2048, 2048
          %108 = vsyncadd [#allocation3], %s107
          %s110 = sshll.u32 [#allocation2], 4
          %s111 = int_to_ptr.vmem [resolvable:$true] %s110
          %113 = dma.hbm_to_vmem [thread:$0]  %s0, 2048, %s111, [#allocation3]
        $region16: #{pallas_linear.1} parent=11 // pred_fallthru
          _
      $region12: #{pallas_linear.1} parent=5 // pred_fallthru
        _
      %p114 = scmp.lt.s32.totalorder %s15, 4
      // Predicated region
      $region17: #{pallas_linear.1} parent=5 // pred_check
        %p115 = pneg %p114
      $region18: #{pallas_linear.1} parent=5 // pred_check_branch
        %117 = sbr.rel (%p115) target = $region20
      $region19: #{pallas_linear.1} parent=5 // pred_region
        // Predicated region
        $region21: #{pallas_linear.1} parent=19 // pred_check
          %p118 = pneg %p56
        $region22: #{pallas_linear.1} parent=19 // pred_check_branch
          %120 = sbr.rel (%p118) target = $region24
        $region23: #{pallas_linear.1} parent=19 // pred_region
          %s121 = sand.u32 %s46, 1
          %s122 = scalar_lea.sflag [#allocation6], %s121
          %s123 = sand.u32 %s46, 1
          %s124 = smul.addr %s123, 8192
          %s125 = scalar_lea.vmem [#allocation5], %s124
          %s126 = smul.u32 64, %s15
          %s128 = ssub.s32 131072, 131072
          %129 = vsyncadd %s122, %s128
          %s130 = smul.addr %s126, 16
          %s131 = smul.addr %s130, 128
          %s132 = scalar_lea.hbm %s1, %s131
          %s133 = sshll.u32 %s125, 4
          %s134 = int_to_ptr.vmem [resolvable:$true] %s133
          %139 = dma.hbm_to_vmem [thread:$0]  %s132, 131072, %s134, %s122, 2048, 2048, 128
        $region24: #{pallas_linear.1} parent=19 // pred_fallthru
          _
      $region20: #{pallas_linear.1} parent=5 // pred_fallthru
        _
      %p140 = scmp.le.s32.totalorder 1, %s15
      %p141 = scmp.lt.s32.totalorder %s15, 5
      %p142 = pnand %p140, %p141
      %p143 = pneg %p142
      // Predicated region
      $region25: #{pallas_linear.1} parent=5 // pred_check
        _
      $region26: #{pallas_linear.1} parent=5 // pred_check_branch
        %145 = sbr.rel (%p142) target = $region28
      $region27: #{pallas_linear.1} parent=5 // pred_region
        %s146 = ssub.s32 %s15, 1
        // Predicated region
        $region29: #{pallas_linear.1} parent=27 // pred_check
          %p147 = pneg %p36
        $region30: #{pallas_linear.1} parent=27 // pred_check_branch
          %149 = sbr.rel (%p147) target = $region32
        $region31: #{pallas_linear.1} parent=27 // pred_region
          %150 = dma.done [#allocation3], 2048
        $region32: #{pallas_linear.1} parent=27 // pred_fallthru
          _
        %s151 = sand.u32 %s49, 1
        %s152 = scalar_lea.sflag [#allocation6], %s151
        %s153 = sand.u32 %s49, 1
        %s154 = smul.addr %s153, 8192
        %s155 = scalar_lea.vmem [#allocation5], %s154
        // Predicated region
        $region33: #{pallas_linear.1} parent=27 // pred_check
          %p156 = pneg %p62
        $region34: #{pallas_linear.1} parent=27 // pred_check_branch
          %158 = sbr.rel (%p156) target = $region36
        $region35: #{pallas_linear.1} parent=27 // pred_region
          %159 = dma.done %s152, 131072
        $region36: #{pallas_linear.1} parent=27 // pred_fallthru
          _
        %p160 = pneg %p36
        %p161 = pneg %p33
        %s162 = sand.u32 %s49, 1
        %s163 = scalar_lea.sflag [#allocation6], %s162
        %s164 = sand.u32 %s49, 1
        %s165 = smul.addr %s164, 8192
        %s166 = scalar_lea.vmem [#allocation5], %s165
        %p167 = pneg %p62
        %p168 = pneg %p59
        %p169 = pneg %p88
        %p170 = pneg %p85
        %s171 = sand.u32 %s75, 1
        %s172 = scalar_lea.sflag [#allocation4], %s171
        %s173 = sand.u32 %s75, 1
        %s174 = smul.addr %s173, 32
        %s175 = scalar_lea.vmem [#allocation7], %s174
        %s176 = smul.u32 64, %s20
        %s177 = smul.u32 4, %s20
        %v178 = vld [vmem:[#allocation2] sm:$0xff]
        %v179 = vld [vmem:[#allocation2 + $0x8] sm:$0xff]
        %v180 = vld [vmem:[#allocation2 + $0x10] sm:$0xff]
        %v181 = vld [vmem:[#allocation2 + $0x18] sm:$0xff]
        %v182 = vld [vmem:[#allocation2 + $0x20] sm:$0xff]
        %v183 = vld [vmem:[#allocation2 + $0x28] sm:$0xff]
        %v184 = vld [vmem:[#allocation2 + $0x30] sm:$0xff]
        %v185 = vld [vmem:[#allocation2 + $0x38] sm:$0xff]
        %v186 = vld [vmem:[#allocation2 + $0x40] sm:$0xff]
        %v187 = vld [vmem:[#allocation2 + $0x48] sm:$0xff]
        %v188 = vld [vmem:[#allocation2 + $0x50] sm:$0xff]
        %v189 = vld [vmem:[#allocation2 + $0x58] sm:$0xff]
        %v190 = vld [vmem:[#allocation2 + $0x60] sm:$0xff]
        %v191 = vld [vmem:[#allocation2 + $0x68] sm:$0xff]
        %v192 = vld [vmem:[#allocation2 + $0x70] sm:$0xff]
        %v193 = vld [vmem:[#allocation2 + $0x78] sm:$0xff]
        %v194 = vld [vmem:[%s155] sm:$0xff]
        %v195 = vld [vmem:[%s155 + $0x8] sm:$0xff]
        %v196 = vld [vmem:[%s155 + $0x10] sm:$0xff]
        %v197 = vld [vmem:[%s155 + $0x18] sm:$0xff]
        %v198 = vld [vmem:[%s155 + $0x20] sm:$0xff]
        %v199 = vld [vmem:[%s155 + $0x28] sm:$0xff]
        %v200 = vld [vmem:[%s155 + $0x30] sm:$0xff]
        %v201 = vld [vmem:[%s155 + $0x38] sm:$0xff]
        %v202 = vld [vmem:[%s155 + $0x40] sm:$0xff]
        %v203 = vld [vmem:[%s155 + $0x48] sm:$0xff]
        %v204 = vld [vmem:[%s155 + $0x50] sm:$0xff]
        %v205 = vld [vmem:[%s155 + $0x58] sm:$0xff]
        %v206 = vld [vmem:[%s155 + $0x60] sm:$0xff]
        %v207 = vld [vmem:[%s155 + $0x68] sm:$0xff]
        %v208 = vld [vmem:[%s155 + $0x70] sm:$0xff]
        %v209 = vld [vmem:[%s155 + $0x78] sm:$0xff]
        %v210 = vld [vmem:[%s155 + $0x80] sm:$0xff]
        %v211 = vld [vmem:[%s155 + $0x88] sm:$0xff]
        %v212 = vld [vmem:[%s155 + $0x90] sm:$0xff]
        %v213 = vld [vmem:[%s155 + $0x98] sm:$0xff]
        %v214 = vld [vmem:[%s155 + $0xa0] sm:$0xff]
        %v215 = vld [vmem:[%s155 + $0xa8] sm:$0xff]
        %v216 = vld [vmem:[%s155 + $0xb0] sm:$0xff]
        %v217 = vld [vmem:[%s155 + $0xb8] sm:$0xff]
        %v218 = vld [vmem:[%s155 + $0xc0] sm:$0xff]
        %v219 = vld [vmem:[%s155 + $0xc8] sm:$0xff]
        %v220 = vld [vmem:[%s155 + $0xd0] sm:$0xff]
        %v221 = vld [vmem:[%s155 + $0xd8] sm:$0xff]
        %v222 = vld [vmem:[%s155 + $0xe0] sm:$0xff]
        %v223 = vld [vmem:[%s155 + $0xe8] sm:$0xff]
        %v224 = vld [vmem:[%s155 + $0xf0] sm:$0xff]
        %v225 = vld [vmem:[%s155 + $0xf8] sm:$0xff]
        %v226 = vld [vmem:[%s155 + $0x100] sm:$0xff]
        %v227 = vld [vmem:[%s155 + $0x108] sm:$0xff]
        %v228 = vld [vmem:[%s155 + $0x110] sm:$0xff]
        %v229 = vld [vmem:[%s155 + $0x118] sm:$0xff]
        %v230 = vld [vmem:[%s155 + $0x120] sm:$0xff]
        %v231 = vld [vmem:[%s155 + $0x128] sm:$0xff]
        %v232 = vld [vmem:[%s155 + $0x130] sm:$0xff]
        %v233 = vld [vmem:[%s155 + $0x138] sm:$0xff]
        %v234 = vld [vmem:[%s155 + $0x140] sm:$0xff]
        %v235 = vld [vmem:[%s155 + $0x148] sm:$0xff]
        %v236 = vld [vmem:[%s155 + $0x150] sm:$0xff]
        %v237 = vld [vmem:[%s155 + $0x158] sm:$0xff]
        %v238 = vld [vmem:[%s155 + $0x160] sm:$0xff]
        %v239 = vld [vmem:[%s155 + $0x168] sm:$0xff]
        %v240 = vld [vmem:[%s155 + $0x170] sm:$0xff]
        %v241 = vld [vmem:[%s155 + $0x178] sm:$0xff]
        %v242 = vld [vmem:[%s155 + $0x180] sm:$0xff]
        %v243 = vld [vmem:[%s155 + $0x188] sm:$0xff]
        %v244 = vld [vmem:[%s155 + $0x190] sm:$0xff]
        %v245 = vld [vmem:[%s155 + $0x198] sm:$0xff]
        %v246 = vld [vmem:[%s155 + $0x1a0] sm:$0xff]
        %v247 = vld [vmem:[%s155 + $0x1a8] sm:$0xff]
        %v248 = vld [vmem:[%s155 + $0x1b0] sm:$0xff]
        %v249 = vld [vmem:[%s155 + $0x1b8] sm:$0xff]
        %v250 = vld [vmem:[%s155 + $0x1c0] sm:$0xff]
        %v251 = vld [vmem:[%s155 + $0x1c8] sm:$0xff]
        %v252 = vld [vmem:[%s155 + $0x1d0] sm:$0xff]
        %v253 = vld [vmem:[%s155 + $0x1d8] sm:$0xff]
        %v254 = vld [vmem:[%s155 + $0x1e0] sm:$0xff]
        %v255 = vld [vmem:[%s155 + $0x1e8] sm:$0xff]
        %v256 = vld [vmem:[%s155 + $0x1f0] sm:$0xff]
        %v257 = vld [vmem:[%s155 + $0x1f8] sm:$0xff]
        %v258 = vld [vmem:[%s155 + $0x200] sm:$0xff]
        %v259 = vld [vmem:[%s155 + $0x208] sm:$0xff]
        %v260 = vld [vmem:[%s155 + $0x210] sm:$0xff]
        %v261 = vld [vmem:[%s155 + $0x218] sm:$0xff]
        %v262 = vld [vmem:[%s155 + $0x220] sm:$0xff]
        %v263 = vld [vmem:[%s155 + $0x228] sm:$0xff]
        %v264 = vld [vmem:[%s155 + $0x230] sm:$0xff]
        %v265 = vld [vmem:[%s155 + $0x238] sm:$0xff]
        %v266 = vld [vmem:[%s155 + $0x240] sm:$0xff]
        %v267 = vld [vmem:[%s155 + $0x248] sm:$0xff]
        %v268 = vld [vmem:[%s155 + $0x250] sm:$0xff]
        %v269 = vld [vmem:[%s155 + $0x258] sm:$0xff]
        %v270 = vld [vmem:[%s155 + $0x260] sm:$0xff]
        %v271 = vld [vmem:[%s155 + $0x268] sm:$0xff]
        %v272 = vld [vmem:[%s155 + $0x270] sm:$0xff]
        %v273 = vld [vmem:[%s155 + $0x278] sm:$0xff]
        %v274 = vld [vmem:[%s155 + $0x280] sm:$0xff]
        %v275 = vld [vmem:[%s155 + $0x288] sm:$0xff]
        %v276 = vld [vmem:[%s155 + $0x290] sm:$0xff]
        %v277 = vld [vmem:[%s155 + $0x298] sm:$0xff]
        %v278 = vld [vmem:[%s155 + $0x2a0] sm:$0xff]
        %v279 = vld [vmem:[%s155 + $0x2a8] sm:$0xff]
        %v280 = vld [vmem:[%s155 + $0x2b0] sm:$0xff]
        %v281 = vld [vmem:[%s155 + $0x2b8] sm:$0xff]
        %v282 = vld [vmem:[%s155 + $0x2c0] sm:$0xff]
        %v283 = vld [vmem:[%s155 + $0x2c8] sm:$0xff]
        %v284 = vld [vmem:[%s155 + $0x2d0] sm:$0xff]
        %v285 = vld [vmem:[%s155 + $0x2d8] sm:$0xff]
        %v286 = vld [vmem:[%s155 + $0x2e0] sm:$0xff]
        %v287 = vld [vmem:[%s155 + $0x2e8] sm:$0xff]
        %v288 = vld [vmem:[%s155 + $0x2f0] sm:$0xff]
        %v289 = vld [vmem:[%s155 + $0x2f8] sm:$0xff]
        %v290 = vld [vmem:[%s155 + $0x300] sm:$0xff]
        %v291 = vld [vmem:[%s155 + $0x308] sm:$0xff]
        %v292 = vld [vmem:[%s155 + $0x310] sm:$0xff]
        %v293 = vld [vmem:[%s155 + $0x318] sm:$0xff]
        %v294 = vld [vmem:[%s155 + $0x320] sm:$0xff]
        %v295 = vld [vmem:[%s155 + $0x328] sm:$0xff]
        %v296 = vld [vmem:[%s155 + $0x330] sm:$0xff]
        %v297 = vld [vmem:[%s155 + $0x338] sm:$0xff]
        %v298 = vld [vmem:[%s155 + $0x340] sm:$0xff]
        %v299 = vld [vmem:[%s155 + $0x348] sm:$0xff]
        %v300 = vld [vmem:[%s155 + $0x350] sm:$0xff]
        %v301 = vld [vmem:[%s155 + $0x358] sm:$0xff]
        %v302 = vld [vmem:[%s155 + $0x360] sm:$0xff]
        %v303 = vld [vmem:[%s155 + $0x368] sm:$0xff]
        %v304 = vld [vmem:[%s155 + $0x370] sm:$0xff]
        %v305 = vld [vmem:[%s155 + $0x378] sm:$0xff]
        %v306 = vld [vmem:[%s155 + $0x380] sm:$0xff]
        %v307 = vld [vmem:[%s155 + $0x388] sm:$0xff]
        %v308 = vld [vmem:[%s155 + $0x390] sm:$0xff]
        %v309 = vld [vmem:[%s155 + $0x398] sm:$0xff]
        %v310 = vld [vmem:[%s155 + $0x3a0] sm:$0xff]
        %v311 = vld [vmem:[%s155 + $0x3a8] sm:$0xff]
        %v312 = vld [vmem:[%s155 + $0x3b0] sm:$0xff]
        %v313 = vld [vmem:[%s155 + $0x3b8] sm:$0xff]
        %v314 = vld [vmem:[%s155 + $0x3c0] sm:$0xff]
        %v315 = vld [vmem:[%s155 + $0x3c8] sm:$0xff]
        %v316 = vld [vmem:[%s155 + $0x3d0] sm:$0xff]
        %v317 = vld [vmem:[%s155 + $0x3d8] sm:$0xff]
        %v318 = vld [vmem:[%s155 + $0x3e0] sm:$0xff]
        %v319 = vld [vmem:[%s155 + $0x3e8] sm:$0xff]
        %v320 = vld [vmem:[%s155 + $0x3f0] sm:$0xff]
        %v321 = vld [vmem:[%s155 + $0x3f8] sm:$0xff]
        %v322 = vld [vmem:[%s155 + $0x400] sm:$0xff]
        %v323 = vld [vmem:[%s155 + $0x408] sm:$0xff]
        %v324 = vld [vmem:[%s155 + $0x410] sm:$0xff]
        %v325 = vld [vmem:[%s155 + $0x418] sm:$0xff]
        %v326 = vld [vmem:[%s155 + $0x420] sm:$0xff]
        %v327 = vld [vmem:[%s155 + $0x428] sm:$0xff]
        %v328 = vld [vmem:[%s155 + $0x430] sm:$0xff]
        %v329 = vld [vmem:[%s155 + $0x438] sm:$0xff]
        %v330 = vld [vmem:[%s155 + $0x440] sm:$0xff]
        %v331 = vld [vmem:[%s155 + $0x448] sm:$0xff]
        %v332 = vld [vmem:[%s155 + $0x450] sm:$0xff]
        %v333 = vld [vmem:[%s155 + $0x458] sm:$0xff]
        %v334 = vld [vmem:[%s155 + $0x460] sm:$0xff]
        %v335 = vld [vmem:[%s155 + $0x468] sm:$0xff]
        %v336 = vld [vmem:[%s155 + $0x470] sm:$0xff]
        %v337 = vld [vmem:[%s155 + $0x478] sm:$0xff]
        %v338 = vld [vmem:[%s155 + $0x480] sm:$0xff]
        %v339 = vld [vmem:[%s155 + $0x488] sm:$0xff]
        %v340 = vld [vmem:[%s155 + $0x490] sm:$0xff]
        %v341 = vld [vmem:[%s155 + $0x498] sm:$0xff]
        %v342 = vld [vmem:[%s155 + $0x4a0] sm:$0xff]
        %v343 = vld [vmem:[%s155 + $0x4a8] sm:$0xff]
        %v344 = vld [vmem:[%s155 + $0x4b0] sm:$0xff]
        %v345 = vld [vmem:[%s155 + $0x4b8] sm:$0xff]
        %v346 = vld [vmem:[%s155 + $0x4c0] sm:$0xff]
        %v347 = vld [vmem:[%s155 + $0x4c8] sm:$0xff]
        %v348 = vld [vmem:[%s155 + $0x4d0] sm:$0xff]
        %v349 = vld [vmem:[%s155 + $0x4d8] sm:$0xff]
        %v350 = vld [vmem:[%s155 + $0x4e0] sm:$0xff]
        %v351 = vld [vmem:[%s155 + $0x4e8] sm:$0xff]
        %v352 = vld [vmem:[%s155 + $0x4f0] sm:$0xff]
        %v353 = vld [vmem:[%s155 + $0x4f8] sm:$0xff]
        %v354 = vld [vmem:[%s155 + $0x500] sm:$0xff]
        %v355 = vld [vmem:[%s155 + $0x508] sm:$0xff]
        %v356 = vld [vmem:[%s155 + $0x510] sm:$0xff]
        %v357 = vld [vmem:[%s155 + $0x518] sm:$0xff]
        %v358 = vld [vmem:[%s155 + $0x520] sm:$0xff]
        %v359 = vld [vmem:[%s155 + $0x528] sm:$0xff]
        %v360 = vld [vmem:[%s155 + $0x530] sm:$0xff]
        %v361 = vld [vmem:[%s155 + $0x538] sm:$0xff]
        %v362 = vld [vmem:[%s155 + $0x540] sm:$0xff]
        %v363 = vld [vmem:[%s155 + $0x548] sm:$0xff]
        %v364 = vld [vmem:[%s155 + $0x550] sm:$0xff]
        %v365 = vld [vmem:[%s155 + $0x558] sm:$0xff]
        %v366 = vld [vmem:[%s155 + $0x560] sm:$0xff]
        %v367 = vld [vmem:[%s155 + $0x568] sm:$0xff]
        %v368 = vld [vmem:[%s155 + $0x570] sm:$0xff]
        %v369 = vld [vmem:[%s155 + $0x578] sm:$0xff]
        %v370 = vld [vmem:[%s155 + $0x580] sm:$0xff]
        %v371 = vld [vmem:[%s155 + $0x588] sm:$0xff]
        %v372 = vld [vmem:[%s155 + $0x590] sm:$0xff]
        %v373 = vld [vmem:[%s155 + $0x598] sm:$0xff]
        %v374 = vld [vmem:[%s155 + $0x5a0] sm:$0xff]
        %v375 = vld [vmem:[%s155 + $0x5a8] sm:$0xff]
        %v376 = vld [vmem:[%s155 + $0x5b0] sm:$0xff]
        %v377 = vld [vmem:[%s155 + $0x5b8] sm:$0xff]
        %v378 = vld [vmem:[%s155 + $0x5c0] sm:$0xff]
        %v379 = vld [vmem:[%s155 + $0x5c8] sm:$0xff]
        %v380 = vld [vmem:[%s155 + $0x5d0] sm:$0xff]
        %v381 = vld [vmem:[%s155 + $0x5d8] sm:$0xff]
        %v382 = vld [vmem:[%s155 + $0x5e0] sm:$0xff]
        %v383 = vld [vmem:[%s155 + $0x5e8] sm:$0xff]
        %v384 = vld [vmem:[%s155 + $0x5f0] sm:$0xff]
        %v385 = vld [vmem:[%s155 + $0x5f8] sm:$0xff]
        %v386 = vld [vmem:[%s155 + $0x600] sm:$0xff]
        %v387 = vld [vmem:[%s155 + $0x608] sm:$0xff]
        %v388 = vld [vmem:[%s155 + $0x610] sm:$0xff]
        %v389 = vld [vmem:[%s155 + $0x618] sm:$0xff]
        %v390 = vld [vmem:[%s155 + $0x620] sm:$0xff]
        %v391 = vld [vmem:[%s155 + $0x628] sm:$0xff]
        %v392 = vld [vmem:[%s155 + $0x630] sm:$0xff]
        %v393 = vld [vmem:[%s155 + $0x638] sm:$0xff]
        %v394 = vld [vmem:[%s155 + $0x640] sm:$0xff]
        %v395 = vld [vmem:[%s155 + $0x648] sm:$0xff]
        %v396 = vld [vmem:[%s155 + $0x650] sm:$0xff]
        %v397 = vld [vmem:[%s155 + $0x658] sm:$0xff]
        %v398 = vld [vmem:[%s155 + $0x660] sm:$0xff]
        %v399 = vld [vmem:[%s155 + $0x668] sm:$0xff]
        %v400 = vld [vmem:[%s155 + $0x670] sm:$0xff]
        %v401 = vld [vmem:[%s155 + $0x678] sm:$0xff]
        %v402 = vld [vmem:[%s155 + $0x680] sm:$0xff]
        %v403 = vld [vmem:[%s155 + $0x688] sm:$0xff]
        %v404 = vld [vmem:[%s155 + $0x690] sm:$0xff]
        %v405 = vld [vmem:[%s155 + $0x698] sm:$0xff]
        %v406 = vld [vmem:[%s155 + $0x6a0] sm:$0xff]
        %v407 = vld [vmem:[%s155 + $0x6a8] sm:$0xff]
        %v408 = vld [vmem:[%s155 + $0x6b0] sm:$0xff]
        %v409 = vld [vmem:[%s155 + $0x6b8] sm:$0xff]
        %v410 = vld [vmem:[%s155 + $0x6c0] sm:$0xff]
        %v411 = vld [vmem:[%s155 + $0x6c8] sm:$0xff]
        %v412 = vld [vmem:[%s155 + $0x6d0] sm:$0xff]
        %v413 = vld [vmem:[%s155 + $0x6d8] sm:$0xff]
        %v414 = vld [vmem:[%s155 + $0x6e0] sm:$0xff]
        %v415 = vld [vmem:[%s155 + $0x6e8] sm:$0xff]
        %v416 = vld [vmem:[%s155 + $0x6f0] sm:$0xff]
        %v417 = vld [vmem:[%s155 + $0x6f8] sm:$0xff]
        %v418 = vld [vmem:[%s155 + $0x700] sm:$0xff]
        %v419 = vld [vmem:[%s155 + $0x708] sm:$0xff]
        %v420 = vld [vmem:[%s155 + $0x710] sm:$0xff]
        %v421 = vld [vmem:[%s155 + $0x718] sm:$0xff]
        %v422 = vld [vmem:[%s155 + $0x720] sm:$0xff]
        %v423 = vld [vmem:[%s155 + $0x728] sm:$0xff]
        %v424 = vld [vmem:[%s155 + $0x730] sm:$0xff]
        %v425 = vld [vmem:[%s155 + $0x738] sm:$0xff]
        %v426 = vld [vmem:[%s155 + $0x740] sm:$0xff]
        %v427 = vld [vmem:[%s155 + $0x748] sm:$0xff]
        %v428 = vld [vmem:[%s155 + $0x750] sm:$0xff]
        %v429 = vld [vmem:[%s155 + $0x758] sm:$0xff]
        %v430 = vld [vmem:[%s155 + $0x760] sm:$0xff]
        %v431 = vld [vmem:[%s155 + $0x768] sm:$0xff]
        %v432 = vld [vmem:[%s155 + $0x770] sm:$0xff]
        %v433 = vld [vmem:[%s155 + $0x778] sm:$0xff]
        %v434 = vld [vmem:[%s155 + $0x780] sm:$0xff]
        %v435 = vld [vmem:[%s155 + $0x788] sm:$0xff]
        %v436 = vld [vmem:[%s155 + $0x790] sm:$0xff]
        %v437 = vld [vmem:[%s155 + $0x798] sm:$0xff]
        %v438 = vld [vmem:[%s155 + $0x7a0] sm:$0xff]
        %v439 = vld [vmem:[%s155 + $0x7a8] sm:$0xff]
        %v440 = vld [vmem:[%s155 + $0x7b0] sm:$0xff]
        %v441 = vld [vmem:[%s155 + $0x7b8] sm:$0xff]
        %v442 = vld [vmem:[%s155 + $0x7c0] sm:$0xff]
        %v443 = vld [vmem:[%s155 + $0x7c8] sm:$0xff]
        %v444 = vld [vmem:[%s155 + $0x7d0] sm:$0xff]
        %v445 = vld [vmem:[%s155 + $0x7d8] sm:$0xff]
        %v446 = vld [vmem:[%s155 + $0x7e0] sm:$0xff]
        %v447 = vld [vmem:[%s155 + $0x7e8] sm:$0xff]
        %v448 = vld [vmem:[%s155 + $0x7f0] sm:$0xff]
        %v449 = vld [vmem:[%s155 + $0x7f8] sm:$0xff]
        %v450 = vld [vmem:[%s155 + $0x800] sm:$0xff]
        %v451 = vld [vmem:[%s155 + $0x808] sm:$0xff]
        %v452 = vld [vmem:[%s155 + $0x810] sm:$0xff]
        %v453 = vld [vmem:[%s155 + $0x818] sm:$0xff]
        %v454 = vld [vmem:[%s155 + $0x820] sm:$0xff]
        %v455 = vld [vmem:[%s155 + $0x828] sm:$0xff]
        %v456 = vld [vmem:[%s155 + $0x830] sm:$0xff]
        %v457 = vld [vmem:[%s155 + $0x838] sm:$0xff]
        %v458 = vld [vmem:[%s155 + $0x840] sm:$0xff]
        %v459 = vld [vmem:[%s155 + $0x848] sm:$0xff]
        %v460 = vld [vmem:[%s155 + $0x850] sm:$0xff]
        %v461 = vld [vmem:[%s155 + $0x858] sm:$0xff]
        %v462 = vld [vmem:[%s155 + $0x860] sm:$0xff]
        %v463 = vld [vmem:[%s155 + $0x868] sm:$0xff]
        %v464 = vld [vmem:[%s155 + $0x870] sm:$0xff]
        %v465 = vld [vmem:[%s155 + $0x878] sm:$0xff]
        %v466 = vld [vmem:[%s155 + $0x880] sm:$0xff]
        %v467 = vld [vmem:[%s155 + $0x888] sm:$0xff]
        %v468 = vld [vmem:[%s155 + $0x890] sm:$0xff]
        %v469 = vld [vmem:[%s155 + $0x898] sm:$0xff]
        %v470 = vld [vmem:[%s155 + $0x8a0] sm:$0xff]
        %v471 = vld [vmem:[%s155 + $0x8a8] sm:$0xff]
        %v472 = vld [vmem:[%s155 + $0x8b0] sm:$0xff]
        %v473 = vld [vmem:[%s155 + $0x8b8] sm:$0xff]
        %v474 = vld [vmem:[%s155 + $0x8c0] sm:$0xff]
        %v475 = vld [vmem:[%s155 + $0x8c8] sm:$0xff]
        %v476 = vld [vmem:[%s155 + $0x8d0] sm:$0xff]
        %v477 = vld [vmem:[%s155 + $0x8d8] sm:$0xff]
        %v478 = vld [vmem:[%s155 + $0x8e0] sm:$0xff]
        %v479 = vld [vmem:[%s155 + $0x8e8] sm:$0xff]
        %v480 = vld [vmem:[%s155 + $0x8f0] sm:$0xff]
        %v481 = vld [vmem:[%s155 + $0x8f8] sm:$0xff]
        %v482 = vld [vmem:[%s155 + $0x900] sm:$0xff]
        %v483 = vld [vmem:[%s155 + $0x908] sm:$0xff]
        %v484 = vld [vmem:[%s155 + $0x910] sm:$0xff]
        %v485 = vld [vmem:[%s155 + $0x918] sm:$0xff]
        %v486 = vld [vmem:[%s155 + $0x920] sm:$0xff]
        %v487 = vld [vmem:[%s155 + $0x928] sm:$0xff]
        %v488 = vld [vmem:[%s155 + $0x930] sm:$0xff]
        %v489 = vld [vmem:[%s155 + $0x938] sm:$0xff]
        %v490 = vld [vmem:[%s155 + $0x940] sm:$0xff]
        %v491 = vld [vmem:[%s155 + $0x948] sm:$0xff]
        %v492 = vld [vmem:[%s155 + $0x950] sm:$0xff]
        %v493 = vld [vmem:[%s155 + $0x958] sm:$0xff]
        %v494 = vld [vmem:[%s155 + $0x960] sm:$0xff]
        %v495 = vld [vmem:[%s155 + $0x968] sm:$0xff]
        %v496 = vld [vmem:[%s155 + $0x970] sm:$0xff]
        %v497 = vld [vmem:[%s155 + $0x978] sm:$0xff]
        %v498 = vld [vmem:[%s155 + $0x980] sm:$0xff]
        %v499 = vld [vmem:[%s155 + $0x988] sm:$0xff]
        %v500 = vld [vmem:[%s155 + $0x990] sm:$0xff]
        %v501 = vld [vmem:[%s155 + $0x998] sm:$0xff]
        %v502 = vld [vmem:[%s155 + $0x9a0] sm:$0xff]
        %v503 = vld [vmem:[%s155 + $0x9a8] sm:$0xff]
        %v504 = vld [vmem:[%s155 + $0x9b0] sm:$0xff]
        %v505 = vld [vmem:[%s155 + $0x9b8] sm:$0xff]
        %v506 = vld [vmem:[%s155 + $0x9c0] sm:$0xff]
        %v507 = vld [vmem:[%s155 + $0x9c8] sm:$0xff]
        %v508 = vld [vmem:[%s155 + $0x9d0] sm:$0xff]
        %v509 = vld [vmem:[%s155 + $0x9d8] sm:$0xff]
        %v510 = vld [vmem:[%s155 + $0x9e0] sm:$0xff]
        %v511 = vld [vmem:[%s155 + $0x9e8] sm:$0xff]
        %v512 = vld [vmem:[%s155 + $0x9f0] sm:$0xff]
        %v513 = vld [vmem:[%s155 + $0x9f8] sm:$0xff]
        %v514 = vld [vmem:[%s155 + $0xa00] sm:$0xff]
        %v515 = vld [vmem:[%s155 + $0xa08] sm:$0xff]
        %v516 = vld [vmem:[%s155 + $0xa10] sm:$0xff]
        %v517 = vld [vmem:[%s155 + $0xa18] sm:$0xff]
        %v518 = vld [vmem:[%s155 + $0xa20] sm:$0xff]
        %v519 = vld [vmem:[%s155 + $0xa28] sm:$0xff]
        %v520 = vld [vmem:[%s155 + $0xa30] sm:$0xff]
        %v521 = vld [vmem:[%s155 + $0xa38] sm:$0xff]
        %v522 = vld [vmem:[%s155 + $0xa40] sm:$0xff]
        %v523 = vld [vmem:[%s155 + $0xa48] sm:$0xff]
        %v524 = vld [vmem:[%s155 + $0xa50] sm:$0xff]
        %v525 = vld [vmem:[%s155 + $0xa58] sm:$0xff]
        %v526 = vld [vmem:[%s155 + $0xa60] sm:$0xff]
        %v527 = vld [vmem:[%s155 + $0xa68] sm:$0xff]
        %v528 = vld [vmem:[%s155 + $0xa70] sm:$0xff]
        %v529 = vld [vmem:[%s155 + $0xa78] sm:$0xff]
        %v530 = vld [vmem:[%s155 + $0xa80] sm:$0xff]
        %v531 = vld [vmem:[%s155 + $0xa88] sm:$0xff]
        %v532 = vld [vmem:[%s155 + $0xa90] sm:$0xff]
        %v533 = vld [vmem:[%s155 + $0xa98] sm:$0xff]
        %v534 = vld [vmem:[%s155 + $0xaa0] sm:$0xff]
        %v535 = vld [vmem:[%s155 + $0xaa8] sm:$0xff]
        %v536 = vld [vmem:[%s155 + $0xab0] sm:$0xff]
        %v537 = vld [vmem:[%s155 + $0xab8] sm:$0xff]
        %v538 = vld [vmem:[%s155 + $0xac0] sm:$0xff]
        %v539 = vld [vmem:[%s155 + $0xac8] sm:$0xff]
        %v540 = vld [vmem:[%s155 + $0xad0] sm:$0xff]
        %v541 = vld [vmem:[%s155 + $0xad8] sm:$0xff]
        %v542 = vld [vmem:[%s155 + $0xae0] sm:$0xff]
        %v543 = vld [vmem:[%s155 + $0xae8] sm:$0xff]
        %v544 = vld [vmem:[%s155 + $0xaf0] sm:$0xff]
        %v545 = vld [vmem:[%s155 + $0xaf8] sm:$0xff]
        %v546 = vld [vmem:[%s155 + $0xb00] sm:$0xff]
        %v547 = vld [vmem:[%s155 + $0xb08] sm:$0xff]
        %v548 = vld [vmem:[%s155 + $0xb10] sm:$0xff]
        %v549 = vld [vmem:[%s155 + $0xb18] sm:$0xff]
        %v550 = vld [vmem:[%s155 + $0xb20] sm:$0xff]
        %v551 = vld [vmem:[%s155 + $0xb28] sm:$0xff]
        %v552 = vld [vmem:[%s155 + $0xb30] sm:$0xff]
        %v553 = vld [vmem:[%s155 + $0xb38] sm:$0xff]
        %v554 = vld [vmem:[%s155 + $0xb40] sm:$0xff]
        %v555 = vld [vmem:[%s155 + $0xb48] sm:$0xff]
        %v556 = vld [vmem:[%s155 + $0xb50] sm:$0xff]
        %v557 = vld [vmem:[%s155 + $0xb58] sm:$0xff]
        %v558 = vld [vmem:[%s155 + $0xb60] sm:$0xff]
        %v559 = vld [vmem:[%s155 + $0xb68] sm:$0xff]
        %v560 = vld [vmem:[%s155 + $0xb70] sm:$0xff]
        %v561 = vld [vmem:[%s155 + $0xb78] sm:$0xff]
        %v562 = vld [vmem:[%s155 + $0xb80] sm:$0xff]
        %v563 = vld [vmem:[%s155 + $0xb88] sm:$0xff]
        %v564 = vld [vmem:[%s155 + $0xb90] sm:$0xff]
        %v565 = vld [vmem:[%s155 + $0xb98] sm:$0xff]
        %v566 = vld [vmem:[%s155 + $0xba0] sm:$0xff]
        %v567 = vld [vmem:[%s155 + $0xba8] sm:$0xff]
        %v568 = vld [vmem:[%s155 + $0xbb0] sm:$0xff]
        %v569 = vld [vmem:[%s155 + $0xbb8] sm:$0xff]
        %v570 = vld [vmem:[%s155 + $0xbc0] sm:$0xff]
        %v571 = vld [vmem:[%s155 + $0xbc8] sm:$0xff]
        %v572 = vld [vmem:[%s155 + $0xbd0] sm:$0xff]
        %v573 = vld [vmem:[%s155 + $0xbd8] sm:$0xff]
        %v574 = vld [vmem:[%s155 + $0xbe0] sm:$0xff]
        %v575 = vld [vmem:[%s155 + $0xbe8] sm:$0xff]
        %v576 = vld [vmem:[%s155 + $0xbf0] sm:$0xff]
        %v577 = vld [vmem:[%s155 + $0xbf8] sm:$0xff]
        %v578 = vld [vmem:[%s155 + $0xc00] sm:$0xff]
        %v579 = vld [vmem:[%s155 + $0xc08] sm:$0xff]
        %v580 = vld [vmem:[%s155 + $0xc10] sm:$0xff]
        %v581 = vld [vmem:[%s155 + $0xc18] sm:$0xff]
        %v582 = vld [vmem:[%s155 + $0xc20] sm:$0xff]
        %v583 = vld [vmem:[%s155 + $0xc28] sm:$0xff]
        %v584 = vld [vmem:[%s155 + $0xc30] sm:$0xff]
        %v585 = vld [vmem:[%s155 + $0xc38] sm:$0xff]
        %v586 = vld [vmem:[%s155 + $0xc40] sm:$0xff]
        %v587 = vld [vmem:[%s155 + $0xc48] sm:$0xff]
        %v588 = vld [vmem:[%s155 + $0xc50] sm:$0xff]
        %v589 = vld [vmem:[%s155 + $0xc58] sm:$0xff]
        %v590 = vld [vmem:[%s155 + $0xc60] sm:$0xff]
        %v591 = vld [vmem:[%s155 + $0xc68] sm:$0xff]
        %v592 = vld [vmem:[%s155 + $0xc70] sm:$0xff]
        %v593 = vld [vmem:[%s155 + $0xc78] sm:$0xff]
        %v594 = vld [vmem:[%s155 + $0xc80] sm:$0xff]
        %v595 = vld [vmem:[%s155 + $0xc88] sm:$0xff]
        %v596 = vld [vmem:[%s155 + $0xc90] sm:$0xff]
        %v597 = vld [vmem:[%s155 + $0xc98] sm:$0xff]
        %v598 = vld [vmem:[%s155 + $0xca0] sm:$0xff]
        %v599 = vld [vmem:[%s155 + $0xca8] sm:$0xff]
        %v600 = vld [vmem:[%s155 + $0xcb0] sm:$0xff]
        %v601 = vld [vmem:[%s155 + $0xcb8] sm:$0xff]
        %v602 = vld [vmem:[%s155 + $0xcc0] sm:$0xff]
        %v603 = vld [vmem:[%s155 + $0xcc8] sm:$0xff]
        %v604 = vld [vmem:[%s155 + $0xcd0] sm:$0xff]
        %v605 = vld [vmem:[%s155 + $0xcd8] sm:$0xff]
        %v606 = vld [vmem:[%s155 + $0xce0] sm:$0xff]
        %v607 = vld [vmem:[%s155 + $0xce8] sm:$0xff]
        %v608 = vld [vmem:[%s155 + $0xcf0] sm:$0xff]
        %v609 = vld [vmem:[%s155 + $0xcf8] sm:$0xff]
        %v610 = vld [vmem:[%s155 + $0xd00] sm:$0xff]
        %v611 = vld [vmem:[%s155 + $0xd08] sm:$0xff]
        %v612 = vld [vmem:[%s155 + $0xd10] sm:$0xff]
        %v613 = vld [vmem:[%s155 + $0xd18] sm:$0xff]
        %v614 = vld [vmem:[%s155 + $0xd20] sm:$0xff]
        %v615 = vld [vmem:[%s155 + $0xd28] sm:$0xff]
        %v616 = vld [vmem:[%s155 + $0xd30] sm:$0xff]
        %v617 = vld [vmem:[%s155 + $0xd38] sm:$0xff]
        %v618 = vld [vmem:[%s155 + $0xd40] sm:$0xff]
        %v619 = vld [vmem:[%s155 + $0xd48] sm:$0xff]
        %v620 = vld [vmem:[%s155 + $0xd50] sm:$0xff]
        %v621 = vld [vmem:[%s155 + $0xd58] sm:$0xff]
        %v622 = vld [vmem:[%s155 + $0xd60] sm:$0xff]
        %v623 = vld [vmem:[%s155 + $0xd68] sm:$0xff]
        %v624 = vld [vmem:[%s155 + $0xd70] sm:$0xff]
        %v625 = vld [vmem:[%s155 + $0xd78] sm:$0xff]
        %v626 = vld [vmem:[%s155 + $0xd80] sm:$0xff]
        %v627 = vld [vmem:[%s155 + $0xd88] sm:$0xff]
        %v628 = vld [vmem:[%s155 + $0xd90] sm:$0xff]
        %v629 = vld [vmem:[%s155 + $0xd98] sm:$0xff]
        %v630 = vld [vmem:[%s155 + $0xda0] sm:$0xff]
        %v631 = vld [vmem:[%s155 + $0xda8] sm:$0xff]
        %v632 = vld [vmem:[%s155 + $0xdb0] sm:$0xff]
        %v633 = vld [vmem:[%s155 + $0xdb8] sm:$0xff]
        %v634 = vld [vmem:[%s155 + $0xdc0] sm:$0xff]
        %v635 = vld [vmem:[%s155 + $0xdc8] sm:$0xff]
        %v636 = vld [vmem:[%s155 + $0xdd0] sm:$0xff]
        %v637 = vld [vmem:[%s155 + $0xdd8] sm:$0xff]
        %v638 = vld [vmem:[%s155 + $0xde0] sm:$0xff]
        %v639 = vld [vmem:[%s155 + $0xde8] sm:$0xff]
        %v640 = vld [vmem:[%s155 + $0xdf0] sm:$0xff]
        %v641 = vld [vmem:[%s155 + $0xdf8] sm:$0xff]
        %v642 = vld [vmem:[%s155 + $0xe00] sm:$0xff]
        %v643 = vld [vmem:[%s155 + $0xe08] sm:$0xff]
        %v644 = vld [vmem:[%s155 + $0xe10] sm:$0xff]
        %v645 = vld [vmem:[%s155 + $0xe18] sm:$0xff]
        %v646 = vld [vmem:[%s155 + $0xe20] sm:$0xff]
        %v647 = vld [vmem:[%s155 + $0xe28] sm:$0xff]
        %v648 = vld [vmem:[%s155 + $0xe30] sm:$0xff]
        %v649 = vld [vmem:[%s155 + $0xe38] sm:$0xff]
        %v650 = vld [vmem:[%s155 + $0xe40] sm:$0xff]
        %v651 = vld [vmem:[%s155 + $0xe48] sm:$0xff]
        %v652 = vld [vmem:[%s155 + $0xe50] sm:$0xff]
        %v653 = vld [vmem:[%s155 + $0xe58] sm:$0xff]
        %v654 = vld [vmem:[%s155 + $0xe60] sm:$0xff]
        %v655 = vld [vmem:[%s155 + $0xe68] sm:$0xff]
        %v656 = vld [vmem:[%s155 + $0xe70] sm:$0xff]
        %v657 = vld [vmem:[%s155 + $0xe78] sm:$0xff]
        %v658 = vld [vmem:[%s155 + $0xe80] sm:$0xff]
        %v659 = vld [vmem:[%s155 + $0xe88] sm:$0xff]
        %v660 = vld [vmem:[%s155 + $0xe90] sm:$0xff]
        %v661 = vld [vmem:[%s155 + $0xe98] sm:$0xff]
        %v662 = vld [vmem:[%s155 + $0xea0] sm:$0xff]
        %v663 = vld [vmem:[%s155 + $0xea8] sm:$0xff]
        %v664 = vld [vmem:[%s155 + $0xeb0] sm:$0xff]
        %v665 = vld [vmem:[%s155 + $0xeb8] sm:$0xff]
        %v666 = vld [vmem:[%s155 + $0xec0] sm:$0xff]
        %v667 = vld [vmem:[%s155 + $0xec8] sm:$0xff]
        %v668 = vld [vmem:[%s155 + $0xed0] sm:$0xff]
        %v669 = vld [vmem:[%s155 + $0xed8] sm:$0xff]
        %v670 = vld [vmem:[%s155 + $0xee0] sm:$0xff]
        %v671 = vld [vmem:[%s155 + $0xee8] sm:$0xff]
        %v672 = vld [vmem:[%s155 + $0xef0] sm:$0xff]
        %v673 = vld [vmem:[%s155 + $0xef8] sm:$0xff]
        %v674 = vld [vmem:[%s155 + $0xf00] sm:$0xff]
        %v675 = vld [vmem:[%s155 + $0xf08] sm:$0xff]
        %v676 = vld [vmem:[%s155 + $0xf10] sm:$0xff]
        %v677 = vld [vmem:[%s155 + $0xf18] sm:$0xff]
        %v678 = vld [vmem:[%s155 + $0xf20] sm:$0xff]
        %v679 = vld [vmem:[%s155 + $0xf28] sm:$0xff]
        %v680 = vld [vmem:[%s155 + $0xf30] sm:$0xff]
        %v681 = vld [vmem:[%s155 + $0xf38] sm:$0xff]
        %v682 = vld [vmem:[%s155 + $0xf40] sm:$0xff]
        %v683 = vld [vmem:[%s155 + $0xf48] sm:$0xff]
        %v684 = vld [vmem:[%s155 + $0xf50] sm:$0xff]
        %v685 = vld [vmem:[%s155 + $0xf58] sm:$0xff]
        %v686 = vld [vmem:[%s155 + $0xf60] sm:$0xff]
        %v687 = vld [vmem:[%s155 + $0xf68] sm:$0xff]
        %v688 = vld [vmem:[%s155 + $0xf70] sm:$0xff]
        %v689 = vld [vmem:[%s155 + $0xf78] sm:$0xff]
        %v690 = vld [vmem:[%s155 + $0xf80] sm:$0xff]
        %v691 = vld [vmem:[%s155 + $0xf88] sm:$0xff]
        %v692 = vld [vmem:[%s155 + $0xf90] sm:$0xff]
        %v693 = vld [vmem:[%s155 + $0xf98] sm:$0xff]
        %v694 = vld [vmem:[%s155 + $0xfa0] sm:$0xff]
        %v695 = vld [vmem:[%s155 + $0xfa8] sm:$0xff]
        %v696 = vld [vmem:[%s155 + $0xfb0] sm:$0xff]
        %v697 = vld [vmem:[%s155 + $0xfb8] sm:$0xff]
        %v698 = vld [vmem:[%s155 + $0xfc0] sm:$0xff]
        %v699 = vld [vmem:[%s155 + $0xfc8] sm:$0xff]
        %v700 = vld [vmem:[%s155 + $0xfd0] sm:$0xff]
        %v701 = vld [vmem:[%s155 + $0xfd8] sm:$0xff]
        %v702 = vld [vmem:[%s155 + $0xfe0] sm:$0xff]
        %v703 = vld [vmem:[%s155 + $0xfe8] sm:$0xff]
        %v704 = vld [vmem:[%s155 + $0xff0] sm:$0xff]
        %v705 = vld [vmem:[%s155 + $0xff8] sm:$0xff]
        %v706 = vld [vmem:[%s155 + $0x1000] sm:$0xff]
        %v707 = vld [vmem:[%s155 + $0x1008] sm:$0xff]
        %v708 = vld [vmem:[%s155 + $0x1010] sm:$0xff]
        %v709 = vld [vmem:[%s155 + $0x1018] sm:$0xff]
        %v710 = vld [vmem:[%s155 + $0x1020] sm:$0xff]
        %v711 = vld [vmem:[%s155 + $0x1028] sm:$0xff]
        %v712 = vld [vmem:[%s155 + $0x1030] sm:$0xff]
        %v713 = vld [vmem:[%s155 + $0x1038] sm:$0xff]
        %v714 = vld [vmem:[%s155 + $0x1040] sm:$0xff]
        %v715 = vld [vmem:[%s155 + $0x1048] sm:$0xff]
        %v716 = vld [vmem:[%s155 + $0x1050] sm:$0xff]
        %v717 = vld [vmem:[%s155 + $0x1058] sm:$0xff]
        %v718 = vld [vmem:[%s155 + $0x1060] sm:$0xff]
        %v719 = vld [vmem:[%s155 + $0x1068] sm:$0xff]
        %v720 = vld [vmem:[%s155 + $0x1070] sm:$0xff]
        %v721 = vld [vmem:[%s155 + $0x1078] sm:$0xff]
        %v722 = vld [vmem:[%s155 + $0x1080] sm:$0xff]
        %v723 = vld [vmem:[%s155 + $0x1088] sm:$0xff]
        %v724 = vld [vmem:[%s155 + $0x1090] sm:$0xff]
        %v725 = vld [vmem:[%s155 + $0x1098] sm:$0xff]
        %v726 = vld [vmem:[%s155 + $0x10a0] sm:$0xff]
        %v727 = vld [vmem:[%s155 + $0x10a8] sm:$0xff]
        %v728 = vld [vmem:[%s155 + $0x10b0] sm:$0xff]
        %v729 = vld [vmem:[%s155 + $0x10b8] sm:$0xff]
        %v730 = vld [vmem:[%s155 + $0x10c0] sm:$0xff]
        %v731 = vld [vmem:[%s155 + $0x10c8] sm:$0xff]
        %v732 = vld [vmem:[%s155 + $0x10d0] sm:$0xff]
        %v733 = vld [vmem:[%s155 + $0x10d8] sm:$0xff]
        %v734 = vld [vmem:[%s155 + $0x10e0] sm:$0xff]
        %v735 = vld [vmem:[%s155 + $0x10e8] sm:$0xff]
        %v736 = vld [vmem:[%s155 + $0x10f0] sm:$0xff]
        %v737 = vld [vmem:[%s155 + $0x10f8] sm:$0xff]
        %v738 = vld [vmem:[%s155 + $0x1100] sm:$0xff]
        %v739 = vld [vmem:[%s155 + $0x1108] sm:$0xff]
        %v740 = vld [vmem:[%s155 + $0x1110] sm:$0xff]
        %v741 = vld [vmem:[%s155 + $0x1118] sm:$0xff]
        %v742 = vld [vmem:[%s155 + $0x1120] sm:$0xff]
        %v743 = vld [vmem:[%s155 + $0x1128] sm:$0xff]
        %v744 = vld [vmem:[%s155 + $0x1130] sm:$0xff]
        %v745 = vld [vmem:[%s155 + $0x1138] sm:$0xff]
        %v746 = vld [vmem:[%s155 + $0x1140] sm:$0xff]
        %v747 = vld [vmem:[%s155 + $0x1148] sm:$0xff]
        %v748 = vld [vmem:[%s155 + $0x1150] sm:$0xff]
        %v749 = vld [vmem:[%s155 + $0x1158] sm:$0xff]
        %v750 = vld [vmem:[%s155 + $0x1160] sm:$0xff]
        %v751 = vld [vmem:[%s155 + $0x1168] sm:$0xff]
        %v752 = vld [vmem:[%s155 + $0x1170] sm:$0xff]
        %v753 = vld [vmem:[%s155 + $0x1178] sm:$0xff]
        %v754 = vld [vmem:[%s155 + $0x1180] sm:$0xff]
        %v755 = vld [vmem:[%s155 + $0x1188] sm:$0xff]
        %v756 = vld [vmem:[%s155 + $0x1190] sm:$0xff]
        %v757 = vld [vmem:[%s155 + $0x1198] sm:$0xff]
        %v758 = vld [vmem:[%s155 + $0x11a0] sm:$0xff]
        %v759 = vld [vmem:[%s155 + $0x11a8] sm:$0xff]
        %v760 = vld [vmem:[%s155 + $0x11b0] sm:$0xff]
        %v761 = vld [vmem:[%s155 + $0x11b8] sm:$0xff]
        %v762 = vld [vmem:[%s155 + $0x11c0] sm:$0xff]
        %v763 = vld [vmem:[%s155 + $0x11c8] sm:$0xff]
        %v764 = vld [vmem:[%s155 + $0x11d0] sm:$0xff]
        %v765 = vld [vmem:[%s155 + $0x11d8] sm:$0xff]
        %v766 = vld [vmem:[%s155 + $0x11e0] sm:$0xff]
        %v767 = vld [vmem:[%s155 + $0x11e8] sm:$0xff]
        %v768 = vld [vmem:[%s155 + $0x11f0] sm:$0xff]
        %v769 = vld [vmem:[%s155 + $0x11f8] sm:$0xff]
        %v770 = vld [vmem:[%s155 + $0x1200] sm:$0xff]
        %v771 = vld [vmem:[%s155 + $0x1208] sm:$0xff]
        %v772 = vld [vmem:[%s155 + $0x1210] sm:$0xff]
        %v773 = vld [vmem:[%s155 + $0x1218] sm:$0xff]
        %v774 = vld [vmem:[%s155 + $0x1220] sm:$0xff]
        %v775 = vld [vmem:[%s155 + $0x1228] sm:$0xff]
        %v776 = vld [vmem:[%s155 + $0x1230] sm:$0xff]
        %v777 = vld [vmem:[%s155 + $0x1238] sm:$0xff]
        %v778 = vld [vmem:[%s155 + $0x1240] sm:$0xff]
        %v779 = vld [vmem:[%s155 + $0x1248] sm:$0xff]
        %v780 = vld [vmem:[%s155 + $0x1250] sm:$0xff]
        %v781 = vld [vmem:[%s155 + $0x1258] sm:$0xff]
        %v782 = vld [vmem:[%s155 + $0x1260] sm:$0xff]
        %v783 = vld [vmem:[%s155 + $0x1268] sm:$0xff]
        %v784 = vld [vmem:[%s155 + $0x1270] sm:$0xff]
        %v785 = vld [vmem:[%s155 + $0x1278] sm:$0xff]
        %v786 = vld [vmem:[%s155 + $0x1280] sm:$0xff]
        %v787 = vld [vmem:[%s155 + $0x1288] sm:$0xff]
        %v788 = vld [vmem:[%s155 + $0x1290] sm:$0xff]
        %v789 = vld [vmem:[%s155 + $0x1298] sm:$0xff]
        %v790 = vld [vmem:[%s155 + $0x12a0] sm:$0xff]
        %v791 = vld [vmem:[%s155 + $0x12a8] sm:$0xff]
        %v792 = vld [vmem:[%s155 + $0x12b0] sm:$0xff]
        %v793 = vld [vmem:[%s155 + $0x12b8] sm:$0xff]
        %v794 = vld [vmem:[%s155 + $0x12c0] sm:$0xff]
        %v795 = vld [vmem:[%s155 + $0x12c8] sm:$0xff]
        %v796 = vld [vmem:[%s155 + $0x12d0] sm:$0xff]
        %v797 = vld [vmem:[%s155 + $0x12d8] sm:$0xff]
        %v798 = vld [vmem:[%s155 + $0x12e0] sm:$0xff]
        %v799 = vld [vmem:[%s155 + $0x12e8] sm:$0xff]
        %v800 = vld [vmem:[%s155 + $0x12f0] sm:$0xff]
        %v801 = vld [vmem:[%s155 + $0x12f8] sm:$0xff]
        %v802 = vld [vmem:[%s155 + $0x1300] sm:$0xff]
        %v803 = vld [vmem:[%s155 + $0x1308] sm:$0xff]
        %v804 = vld [vmem:[%s155 + $0x1310] sm:$0xff]
        %v805 = vld [vmem:[%s155 + $0x1318] sm:$0xff]
        %v806 = vld [vmem:[%s155 + $0x1320] sm:$0xff]
        %v807 = vld [vmem:[%s155 + $0x1328] sm:$0xff]
        %v808 = vld [vmem:[%s155 + $0x1330] sm:$0xff]
        %v809 = vld [vmem:[%s155 + $0x1338] sm:$0xff]
        %v810 = vld [vmem:[%s155 + $0x1340] sm:$0xff]
        %v811 = vld [vmem:[%s155 + $0x1348] sm:$0xff]
        %v812 = vld [vmem:[%s155 + $0x1350] sm:$0xff]
        %v813 = vld [vmem:[%s155 + $0x1358] sm:$0xff]
        %v814 = vld [vmem:[%s155 + $0x1360] sm:$0xff]
        %v815 = vld [vmem:[%s155 + $0x1368] sm:$0xff]
        %v816 = vld [vmem:[%s155 + $0x1370] sm:$0xff]
        %v817 = vld [vmem:[%s155 + $0x1378] sm:$0xff]
        %v818 = vld [vmem:[%s155 + $0x1380] sm:$0xff]
        %v819 = vld [vmem:[%s155 + $0x1388] sm:$0xff]
        %v820 = vld [vmem:[%s155 + $0x1390] sm:$0xff]
        %v821 = vld [vmem:[%s155 + $0x1398] sm:$0xff]
        %v822 = vld [vmem:[%s155 + $0x13a0] sm:$0xff]
        %v823 = vld [vmem:[%s155 + $0x13a8] sm:$0xff]
        %v824 = vld [vmem:[%s155 + $0x13b0] sm:$0xff]
        %v825 = vld [vmem:[%s155 + $0x13b8] sm:$0xff]
        %v826 = vld [vmem:[%s155 + $0x13c0] sm:$0xff]
        %v827 = vld [vmem:[%s155 + $0x13c8] sm:$0xff]
        %v828 = vld [vmem:[%s155 + $0x13d0] sm:$0xff]
        %v829 = vld [vmem:[%s155 + $0x13d8] sm:$0xff]
        %v830 = vld [vmem:[%s155 + $0x13e0] sm:$0xff]
        %v831 = vld [vmem:[%s155 + $0x13e8] sm:$0xff]
        %v832 = vld [vmem:[%s155 + $0x13f0] sm:$0xff]
        %v833 = vld [vmem:[%s155 + $0x13f8] sm:$0xff]
        %v834 = vld [vmem:[%s155 + $0x1400] sm:$0xff]
        %v835 = vld [vmem:[%s155 + $0x1408] sm:$0xff]
        %v836 = vld [vmem:[%s155 + $0x1410] sm:$0xff]
        %v837 = vld [vmem:[%s155 + $0x1418] sm:$0xff]
        %v838 = vld [vmem:[%s155 + $0x1420] sm:$0xff]
        %v839 = vld [vmem:[%s155 + $0x1428] sm:$0xff]
        %v840 = vld [vmem:[%s155 + $0x1430] sm:$0xff]
        %v841 = vld [vmem:[%s155 + $0x1438] sm:$0xff]
        %v842 = vld [vmem:[%s155 + $0x1440] sm:$0xff]
        %v843 = vld [vmem:[%s155 + $0x1448] sm:$0xff]
        %v844 = vld [vmem:[%s155 + $0x1450] sm:$0xff]
        %v845 = vld [vmem:[%s155 + $0x1458] sm:$0xff]
        %v846 = vld [vmem:[%s155 + $0x1460] sm:$0xff]
        %v847 = vld [vmem:[%s155 + $0x1468] sm:$0xff]
        %v848 = vld [vmem:[%s155 + $0x1470] sm:$0xff]
        %v849 = vld [vmem:[%s155 + $0x1478] sm:$0xff]
        %v850 = vld [vmem:[%s155 + $0x1480] sm:$0xff]
        %v851 = vld [vmem:[%s155 + $0x1488] sm:$0xff]
        %v852 = vld [vmem:[%s155 + $0x1490] sm:$0xff]
        %v853 = vld [vmem:[%s155 + $0x1498] sm:$0xff]
        %v854 = vld [vmem:[%s155 + $0x14a0] sm:$0xff]
        %v855 = vld [vmem:[%s155 + $0x14a8] sm:$0xff]
        %v856 = vld [vmem:[%s155 + $0x14b0] sm:$0xff]
        %v857 = vld [vmem:[%s155 + $0x14b8] sm:$0xff]
        %v858 = vld [vmem:[%s155 + $0x14c0] sm:$0xff]
        %v859 = vld [vmem:[%s155 + $0x14c8] sm:$0xff]
        %v860 = vld [vmem:[%s155 + $0x14d0] sm:$0xff]
        %v861 = vld [vmem:[%s155 + $0x14d8] sm:$0xff]
        %v862 = vld [vmem:[%s155 + $0x14e0] sm:$0xff]
        %v863 = vld [vmem:[%s155 + $0x14e8] sm:$0xff]
        %v864 = vld [vmem:[%s155 + $0x14f0] sm:$0xff]
        %v865 = vld [vmem:[%s155 + $0x14f8] sm:$0xff]
        %v866 = vld [vmem:[%s155 + $0x1500] sm:$0xff]
        %v867 = vld [vmem:[%s155 + $0x1508] sm:$0xff]
        %v868 = vld [vmem:[%s155 + $0x1510] sm:$0xff]
        %v869 = vld [vmem:[%s155 + $0x1518] sm:$0xff]
        %v870 = vld [vmem:[%s155 + $0x1520] sm:$0xff]
        %v871 = vld [vmem:[%s155 + $0x1528] sm:$0xff]
        %v872 = vld [vmem:[%s155 + $0x1530] sm:$0xff]
        %v873 = vld [vmem:[%s155 + $0x1538] sm:$0xff]
        %v874 = vld [vmem:[%s155 + $0x1540] sm:$0xff]
        %v875 = vld [vmem:[%s155 + $0x1548] sm:$0xff]
        %v876 = vld [vmem:[%s155 + $0x1550] sm:$0xff]
        %v877 = vld [vmem:[%s155 + $0x1558] sm:$0xff]
        %v878 = vld [vmem:[%s155 + $0x1560] sm:$0xff]
        %v879 = vld [vmem:[%s155 + $0x1568] sm:$0xff]
        %v880 = vld [vmem:[%s155 + $0x1570] sm:$0xff]
        %v881 = vld [vmem:[%s155 + $0x1578] sm:$0xff]
        %v882 = vld [vmem:[%s155 + $0x1580] sm:$0xff]
        %v883 = vld [vmem:[%s155 + $0x1588] sm:$0xff]
        %v884 = vld [vmem:[%s155 + $0x1590] sm:$0xff]
        %v885 = vld [vmem:[%s155 + $0x1598] sm:$0xff]
        %v886 = vld [vmem:[%s155 + $0x15a0] sm:$0xff]
        %v887 = vld [vmem:[%s155 + $0x15a8] sm:$0xff]
        %v888 = vld [vmem:[%s155 + $0x15b0] sm:$0xff]
        %v889 = vld [vmem:[%s155 + $0x15b8] sm:$0xff]
        %v890 = vld [vmem:[%s155 + $0x15c0] sm:$0xff]
        %v891 = vld [vmem:[%s155 + $0x15c8] sm:$0xff]
        %v892 = vld [vmem:[%s155 + $0x15d0] sm:$0xff]
        %v893 = vld [vmem:[%s155 + $0x15d8] sm:$0xff]
        %v894 = vld [vmem:[%s155 + $0x15e0] sm:$0xff]
        %v895 = vld [vmem:[%s155 + $0x15e8] sm:$0xff]
        %v896 = vld [vmem:[%s155 + $0x15f0] sm:$0xff]
        %v897 = vld [vmem:[%s155 + $0x15f8] sm:$0xff]
        %v898 = vld [vmem:[%s155 + $0x1600] sm:$0xff]
        %v899 = vld [vmem:[%s155 + $0x1608] sm:$0xff]
        %v900 = vld [vmem:[%s155 + $0x1610] sm:$0xff]
        %v901 = vld [vmem:[%s155 + $0x1618] sm:$0xff]
        %v902 = vld [vmem:[%s155 + $0x1620] sm:$0xff]
        %v903 = vld [vmem:[%s155 + $0x1628] sm:$0xff]
        %v904 = vld [vmem:[%s155 + $0x1630] sm:$0xff]
        %v905 = vld [vmem:[%s155 + $0x1638] sm:$0xff]
        %v906 = vld [vmem:[%s155 + $0x1640] sm:$0xff]
        %v907 = vld [vmem:[%s155 + $0x1648] sm:$0xff]
        %v908 = vld [vmem:[%s155 + $0x1650] sm:$0xff]
        %v909 = vld [vmem:[%s155 + $0x1658] sm:$0xff]
        %v910 = vld [vmem:[%s155 + $0x1660] sm:$0xff]
        %v911 = vld [vmem:[%s155 + $0x1668] sm:$0xff]
        %v912 = vld [vmem:[%s155 + $0x1670] sm:$0xff]
        %v913 = vld [vmem:[%s155 + $0x1678] sm:$0xff]
        %v914 = vld [vmem:[%s155 + $0x1680] sm:$0xff]
        %v915 = vld [vmem:[%s155 + $0x1688] sm:$0xff]
        %v916 = vld [vmem:[%s155 + $0x1690] sm:$0xff]
        %v917 = vld [vmem:[%s155 + $0x1698] sm:$0xff]
        %v918 = vld [vmem:[%s155 + $0x16a0] sm:$0xff]
        %v919 = vld [vmem:[%s155 + $0x16a8] sm:$0xff]
        %v920 = vld [vmem:[%s155 + $0x16b0] sm:$0xff]
        %v921 = vld [vmem:[%s155 + $0x16b8] sm:$0xff]
        %v922 = vld [vmem:[%s155 + $0x16c0] sm:$0xff]
        %v923 = vld [vmem:[%s155 + $0x16c8] sm:$0xff]
        %v924 = vld [vmem:[%s155 + $0x16d0] sm:$0xff]
        %v925 = vld [vmem:[%s155 + $0x16d8] sm:$0xff]
        %v926 = vld [vmem:[%s155 + $0x16e0] sm:$0xff]
        %v927 = vld [vmem:[%s155 + $0x16e8] sm:$0xff]
        %v928 = vld [vmem:[%s155 + $0x16f0] sm:$0xff]
        %v929 = vld [vmem:[%s155 + $0x16f8] sm:$0xff]
        %v930 = vld [vmem:[%s155 + $0x1700] sm:$0xff]
        %v931 = vld [vmem:[%s155 + $0x1708] sm:$0xff]
        %v932 = vld [vmem:[%s155 + $0x1710] sm:$0xff]
        %v933 = vld [vmem:[%s155 + $0x1718] sm:$0xff]
        %v934 = vld [vmem:[%s155 + $0x1720] sm:$0xff]
        %v935 = vld [vmem:[%s155 + $0x1728] sm:$0xff]
        %v936 = vld [vmem:[%s155 + $0x1730] sm:$0xff]
        %v937 = vld [vmem:[%s155 + $0x1738] sm:$0xff]
        %v938 = vld [vmem:[%s155 + $0x1740] sm:$0xff]
        %v939 = vld [vmem:[%s155 + $0x1748] sm:$0xff]
        %v940 = vld [vmem:[%s155 + $0x1750] sm:$0xff]
        %v941 = vld [vmem:[%s155 + $0x1758] sm:$0xff]
        %v942 = vld [vmem:[%s155 + $0x1760] sm:$0xff]
        %v943 = vld [vmem:[%s155 + $0x1768] sm:$0xff]
        %v944 = vld [vmem:[%s155 + $0x1770] sm:$0xff]
        %v945 = vld [vmem:[%s155 + $0x1778] sm:$0xff]
        %v946 = vld [vmem:[%s155 + $0x1780] sm:$0xff]
        %v947 = vld [vmem:[%s155 + $0x1788] sm:$0xff]
        %v948 = vld [vmem:[%s155 + $0x1790] sm:$0xff]
        %v949 = vld [vmem:[%s155 + $0x1798] sm:$0xff]
        %v950 = vld [vmem:[%s155 + $0x17a0] sm:$0xff]
        %v951 = vld [vmem:[%s155 + $0x17a8] sm:$0xff]
        %v952 = vld [vmem:[%s155 + $0x17b0] sm:$0xff]
        %v953 = vld [vmem:[%s155 + $0x17b8] sm:$0xff]
        %v954 = vld [vmem:[%s155 + $0x17c0] sm:$0xff]
        %v955 = vld [vmem:[%s155 + $0x17c8] sm:$0xff]
        %v956 = vld [vmem:[%s155 + $0x17d0] sm:$0xff]
        %v957 = vld [vmem:[%s155 + $0x17d8] sm:$0xff]
        %v958 = vld [vmem:[%s155 + $0x17e0] sm:$0xff]
        %v959 = vld [vmem:[%s155 + $0x17e8] sm:$0xff]
        %v960 = vld [vmem:[%s155 + $0x17f0] sm:$0xff]
        %v961 = vld [vmem:[%s155 + $0x17f8] sm:$0xff]
        %v962 = vld [vmem:[%s155 + $0x1800] sm:$0xff]
        %v963 = vld [vmem:[%s155 + $0x1808] sm:$0xff]
        %v964 = vld [vmem:[%s155 + $0x1810] sm:$0xff]
        %v965 = vld [vmem:[%s155 + $0x1818] sm:$0xff]
        %v966 = vld [vmem:[%s155 + $0x1820] sm:$0xff]
        %v967 = vld [vmem:[%s155 + $0x1828] sm:$0xff]
        %v968 = vld [vmem:[%s155 + $0x1830] sm:$0xff]
        %v969 = vld [vmem:[%s155 + $0x1838] sm:$0xff]
        %v970 = vld [vmem:[%s155 + $0x1840] sm:$0xff]
        %v971 = vld [vmem:[%s155 + $0x1848] sm:$0xff]
        %v972 = vld [vmem:[%s155 + $0x1850] sm:$0xff]
        %v973 = vld [vmem:[%s155 + $0x1858] sm:$0xff]
        %v974 = vld [vmem:[%s155 + $0x1860] sm:$0xff]
        %v975 = vld [vmem:[%s155 + $0x1868] sm:$0xff]
        %v976 = vld [vmem:[%s155 + $0x1870] sm:$0xff]
        %v977 = vld [vmem:[%s155 + $0x1878] sm:$0xff]
        %v978 = vld [vmem:[%s155 + $0x1880] sm:$0xff]
        %v979 = vld [vmem:[%s155 + $0x1888] sm:$0xff]
        %v980 = vld [vmem:[%s155 + $0x1890] sm:$0xff]
        %v981 = vld [vmem:[%s155 + $0x1898] sm:$0xff]
        %v982 = vld [vmem:[%s155 + $0x18a0] sm:$0xff]
        %v983 = vld [vmem:[%s155 + $0x18a8] sm:$0xff]
        %v984 = vld [vmem:[%s155 + $0x18b0] sm:$0xff]
        %v985 = vld [vmem:[%s155 + $0x18b8] sm:$0xff]
        %v986 = vld [vmem:[%s155 + $0x18c0] sm:$0xff]
        %v987 = vld [vmem:[%s155 + $0x18c8] sm:$0xff]
        %v988 = vld [vmem:[%s155 + $0x18d0] sm:$0xff]
        %v989 = vld [vmem:[%s155 + $0x18d8] sm:$0xff]
        %v990 = vld [vmem:[%s155 + $0x18e0] sm:$0xff]
        %v991 = vld [vmem:[%s155 + $0x18e8] sm:$0xff]
        %v992 = vld [vmem:[%s155 + $0x18f0] sm:$0xff]
        %v993 = vld [vmem:[%s155 + $0x18f8] sm:$0xff]
        %v994 = vld [vmem:[%s155 + $0x1900] sm:$0xff]
        %v995 = vld [vmem:[%s155 + $0x1908] sm:$0xff]
        %v996 = vld [vmem:[%s155 + $0x1910] sm:$0xff]
        %v997 = vld [vmem:[%s155 + $0x1918] sm:$0xff]
        %v998 = vld [vmem:[%s155 + $0x1920] sm:$0xff]
        %v999 = vld [vmem:[%s155 + $0x1928] sm:$0xff]
        %v1000 = vld [vmem:[%s155 + $0x1930] sm:$0xff]
        %v1001 = vld [vmem:[%s155 + $0x1938] sm:$0xff]
        %v1002 = vld [vmem:[%s155 + $0x1940] sm:$0xff]
        %v1003 = vld [vmem:[%s155 + $0x1948] sm:$0xff]
        %v1004 = vld [vmem:[%s155 + $0x1950] sm:$0xff]
        %v1005 = vld [vmem:[%s155 + $0x1958] sm:$0xff]
        %v1006 = vld [vmem:[%s155 + $0x1960] sm:$0xff]
        %v1007 = vld [vmem:[%s155 + $0x1968] sm:$0xff]
        %v1008 = vld [vmem:[%s155 + $0x1970] sm:$0xff]
        %v1009 = vld [vmem:[%s155 + $0x1978] sm:$0xff]
        %v1010 = vld [vmem:[%s155 + $0x1980] sm:$0xff]
        %v1011 = vld [vmem:[%s155 + $0x1988] sm:$0xff]
        %v1012 = vld [vmem:[%s155 + $0x1990] sm:$0xff]
        %v1013 = vld [vmem:[%s155 + $0x1998] sm:$0xff]
        %v1014 = vld [vmem:[%s155 + $0x19a0] sm:$0xff]
        %v1015 = vld [vmem:[%s155 + $0x19a8] sm:$0xff]
        %v1016 = vld [vmem:[%s155 + $0x19b0] sm:$0xff]
        %v1017 = vld [vmem:[%s155 + $0x19b8] sm:$0xff]
        %v1018 = vld [vmem:[%s155 + $0x19c0] sm:$0xff]
        %v1019 = vld [vmem:[%s155 + $0x19c8] sm:$0xff]
        %v1020 = vld [vmem:[%s155 + $0x19d0] sm:$0xff]
        %v1021 = vld [vmem:[%s155 + $0x19d8] sm:$0xff]
        %v1022 = vld [vmem:[%s155 + $0x19e0] sm:$0xff]
        %v1023 = vld [vmem:[%s155 + $0x19e8] sm:$0xff]
        %v1024 = vld [vmem:[%s155 + $0x19f0] sm:$0xff]
        %v1025 = vld [vmem:[%s155 + $0x19f8] sm:$0xff]
        %v1026 = vld [vmem:[%s155 + $0x1a00] sm:$0xff]
        %v1027 = vld [vmem:[%s155 + $0x1a08] sm:$0xff]
        %v1028 = vld [vmem:[%s155 + $0x1a10] sm:$0xff]
        %v1029 = vld [vmem:[%s155 + $0x1a18] sm:$0xff]
        %v1030 = vld [vmem:[%s155 + $0x1a20] sm:$0xff]
        %v1031 = vld [vmem:[%s155 + $0x1a28] sm:$0xff]
        %v1032 = vld [vmem:[%s155 + $0x1a30] sm:$0xff]
        %v1033 = vld [vmem:[%s155 + $0x1a38] sm:$0xff]
        %v1034 = vld [vmem:[%s155 + $0x1a40] sm:$0xff]
        %v1035 = vld [vmem:[%s155 + $0x1a48] sm:$0xff]
        %v1036 = vld [vmem:[%s155 + $0x1a50] sm:$0xff]
        %v1037 = vld [vmem:[%s155 + $0x1a58] sm:$0xff]
        %v1038 = vld [vmem:[%s155 + $0x1a60] sm:$0xff]
        %v1039 = vld [vmem:[%s155 + $0x1a68] sm:$0xff]
        %v1040 = vld [vmem:[%s155 + $0x1a70] sm:$0xff]
        %v1041 = vld [vmem:[%s155 + $0x1a78] sm:$0xff]
        %v1042 = vld [vmem:[%s155 + $0x1a80] sm:$0xff]
        %v1043 = vld [vmem:[%s155 + $0x1a88] sm:$0xff]
        %v1044 = vld [vmem:[%s155 + $0x1a90] sm:$0xff]
        %v1045 = vld [vmem:[%s155 + $0x1a98] sm:$0xff]
        %v1046 = vld [vmem:[%s155 + $0x1aa0] sm:$0xff]
        %v1047 = vld [vmem:[%s155 + $0x1aa8] sm:$0xff]
        %v1048 = vld [vmem:[%s155 + $0x1ab0] sm:$0xff]
        %v1049 = vld [vmem:[%s155 + $0x1ab8] sm:$0xff]
        %v1050 = vld [vmem:[%s155 + $0x1ac0] sm:$0xff]
        %v1051 = vld [vmem:[%s155 + $0x1ac8] sm:$0xff]
        %v1052 = vld [vmem:[%s155 + $0x1ad0] sm:$0xff]
        %v1053 = vld [vmem:[%s155 + $0x1ad8] sm:$0xff]
        %v1054 = vld [vmem:[%s155 + $0x1ae0] sm:$0xff]
        %v1055 = vld [vmem:[%s155 + $0x1ae8] sm:$0xff]
        %v1056 = vld [vmem:[%s155 + $0x1af0] sm:$0xff]
        %v1057 = vld [vmem:[%s155 + $0x1af8] sm:$0xff]
        %v1058 = vld [vmem:[%s155 + $0x1b00] sm:$0xff]
        %v1059 = vld [vmem:[%s155 + $0x1b08] sm:$0xff]
        %v1060 = vld [vmem:[%s155 + $0x1b10] sm:$0xff]
        %v1061 = vld [vmem:[%s155 + $0x1b18] sm:$0xff]
        %v1062 = vld [vmem:[%s155 + $0x1b20] sm:$0xff]
        %v1063 = vld [vmem:[%s155 + $0x1b28] sm:$0xff]
        %v1064 = vld [vmem:[%s155 + $0x1b30] sm:$0xff]
        %v1065 = vld [vmem:[%s155 + $0x1b38] sm:$0xff]
        %v1066 = vld [vmem:[%s155 + $0x1b40] sm:$0xff]
        %v1067 = vld [vmem:[%s155 + $0x1b48] sm:$0xff]
        %v1068 = vld [vmem:[%s155 + $0x1b50] sm:$0xff]
        %v1069 = vld [vmem:[%s155 + $0x1b58] sm:$0xff]
        %v1070 = vld [vmem:[%s155 + $0x1b60] sm:$0xff]
        %v1071 = vld [vmem:[%s155 + $0x1b68] sm:$0xff]
        %v1072 = vld [vmem:[%s155 + $0x1b70] sm:$0xff]
        %v1073 = vld [vmem:[%s155 + $0x1b78] sm:$0xff]
        %v1074 = vld [vmem:[%s155 + $0x1b80] sm:$0xff]
        %v1075 = vld [vmem:[%s155 + $0x1b88] sm:$0xff]
        %v1076 = vld [vmem:[%s155 + $0x1b90] sm:$0xff]
        %v1077 = vld [vmem:[%s155 + $0x1b98] sm:$0xff]
        %v1078 = vld [vmem:[%s155 + $0x1ba0] sm:$0xff]
        %v1079 = vld [vmem:[%s155 + $0x1ba8] sm:$0xff]
        %v1080 = vld [vmem:[%s155 + $0x1bb0] sm:$0xff]
        %v1081 = vld [vmem:[%s155 + $0x1bb8] sm:$0xff]
        %v1082 = vld [vmem:[%s155 + $0x1bc0] sm:$0xff]
        %v1083 = vld [vmem:[%s155 + $0x1bc8] sm:$0xff]
        %v1084 = vld [vmem:[%s155 + $0x1bd0] sm:$0xff]
        %v1085 = vld [vmem:[%s155 + $0x1bd8] sm:$0xff]
        %v1086 = vld [vmem:[%s155 + $0x1be0] sm:$0xff]
        %v1087 = vld [vmem:[%s155 + $0x1be8] sm:$0xff]
        %v1088 = vld [vmem:[%s155 + $0x1bf0] sm:$0xff]
        %v1089 = vld [vmem:[%s155 + $0x1bf8] sm:$0xff]
        %v1090 = vld [vmem:[%s155 + $0x1c00] sm:$0xff]
        %v1091 = vld [vmem:[%s155 + $0x1c08] sm:$0xff]
        %v1092 = vld [vmem:[%s155 + $0x1c10] sm:$0xff]
        %v1093 = vld [vmem:[%s155 + $0x1c18] sm:$0xff]
        %v1094 = vld [vmem:[%s155 + $0x1c20] sm:$0xff]
        %v1095 = vld [vmem:[%s155 + $0x1c28] sm:$0xff]
        %v1096 = vld [vmem:[%s155 + $0x1c30] sm:$0xff]
        %v1097 = vld [vmem:[%s155 + $0x1c38] sm:$0xff]
        %v1098 = vld [vmem:[%s155 + $0x1c40] sm:$0xff]
        %v1099 = vld [vmem:[%s155 + $0x1c48] sm:$0xff]
        %v1100 = vld [vmem:[%s155 + $0x1c50] sm:$0xff]
        %v1101 = vld [vmem:[%s155 + $0x1c58] sm:$0xff]
        %v1102 = vld [vmem:[%s155 + $0x1c60] sm:$0xff]
        %v1103 = vld [vmem:[%s155 + $0x1c68] sm:$0xff]
        %v1104 = vld [vmem:[%s155 + $0x1c70] sm:$0xff]
        %v1105 = vld [vmem:[%s155 + $0x1c78] sm:$0xff]
        %v1106 = vld [vmem:[%s155 + $0x1c80] sm:$0xff]
        %v1107 = vld [vmem:[%s155 + $0x1c88] sm:$0xff]
        %v1108 = vld [vmem:[%s155 + $0x1c90] sm:$0xff]
        %v1109 = vld [vmem:[%s155 + $0x1c98] sm:$0xff]
        %v1110 = vld [vmem:[%s155 + $0x1ca0] sm:$0xff]
        %v1111 = vld [vmem:[%s155 + $0x1ca8] sm:$0xff]
        %v1112 = vld [vmem:[%s155 + $0x1cb0] sm:$0xff]
        %v1113 = vld [vmem:[%s155 + $0x1cb8] sm:$0xff]
        %v1114 = vld [vmem:[%s155 + $0x1cc0] sm:$0xff]
        %v1115 = vld [vmem:[%s155 + $0x1cc8] sm:$0xff]
        %v1116 = vld [vmem:[%s155 + $0x1cd0] sm:$0xff]
        %v1117 = vld [vmem:[%s155 + $0x1cd8] sm:$0xff]
        %v1118 = vld [vmem:[%s155 + $0x1ce0] sm:$0xff]
        %v1119 = vld [vmem:[%s155 + $0x1ce8] sm:$0xff]
        %v1120 = vld [vmem:[%s155 + $0x1cf0] sm:$0xff]
        %v1121 = vld [vmem:[%s155 + $0x1cf8] sm:$0xff]
        %v1122 = vld [vmem:[%s155 + $0x1d00] sm:$0xff]
        %v1123 = vld [vmem:[%s155 + $0x1d08] sm:$0xff]
        %v1124 = vld [vmem:[%s155 + $0x1d10] sm:$0xff]
        %v1125 = vld [vmem:[%s155 + $0x1d18] sm:$0xff]
        %v1126 = vld [vmem:[%s155 + $0x1d20] sm:$0xff]
        %v1127 = vld [vmem:[%s155 + $0x1d28] sm:$0xff]
        %v1128 = vld [vmem:[%s155 + $0x1d30] sm:$0xff]
        %v1129 = vld [vmem:[%s155 + $0x1d38] sm:$0xff]
        %v1130 = vld [vmem:[%s155 + $0x1d40] sm:$0xff]
        %v1131 = vld [vmem:[%s155 + $0x1d48] sm:$0xff]
        %v1132 = vld [vmem:[%s155 + $0x1d50] sm:$0xff]
        %v1133 = vld [vmem:[%s155 + $0x1d58] sm:$0xff]
        %v1134 = vld [vmem:[%s155 + $0x1d60] sm:$0xff]
        %v1135 = vld [vmem:[%s155 + $0x1d68] sm:$0xff]
        %v1136 = vld [vmem:[%s155 + $0x1d70] sm:$0xff]
        %v1137 = vld [vmem:[%s155 + $0x1d78] sm:$0xff]
        %v1138 = vld [vmem:[%s155 + $0x1d80] sm:$0xff]
        %v1139 = vld [vmem:[%s155 + $0x1d88] sm:$0xff]
        %v1140 = vld [vmem:[%s155 + $0x1d90] sm:$0xff]
        %v1141 = vld [vmem:[%s155 + $0x1d98] sm:$0xff]
        %v1142 = vld [vmem:[%s155 + $0x1da0] sm:$0xff]
        %v1143 = vld [vmem:[%s155 + $0x1da8] sm:$0xff]
        %v1144 = vld [vmem:[%s155 + $0x1db0] sm:$0xff]
        %v1145 = vld [vmem:[%s155 + $0x1db8] sm:$0xff]
        %v1146 = vld [vmem:[%s155 + $0x1dc0] sm:$0xff]
        %v1147 = vld [vmem:[%s155 + $0x1dc8] sm:$0xff]
        %v1148 = vld [vmem:[%s155 + $0x1dd0] sm:$0xff]
        %v1149 = vld [vmem:[%s155 + $0x1dd8] sm:$0xff]
        %v1150 = vld [vmem:[%s155 + $0x1de0] sm:$0xff]
        %v1151 = vld [vmem:[%s155 + $0x1de8] sm:$0xff]
        %v1152 = vld [vmem:[%s155 + $0x1df0] sm:$0xff]
        %v1153 = vld [vmem:[%s155 + $0x1df8] sm:$0xff]
        %v1154 = vld [vmem:[%s155 + $0x1e00] sm:$0xff]
        %v1155 = vld [vmem:[%s155 + $0x1e08] sm:$0xff]
        %v1156 = vld [vmem:[%s155 + $0x1e10] sm:$0xff]
        %v1157 = vld [vmem:[%s155 + $0x1e18] sm:$0xff]
        %v1158 = vld [vmem:[%s155 + $0x1e20] sm:$0xff]
        %v1159 = vld [vmem:[%s155 + $0x1e28] sm:$0xff]
        %v1160 = vld [vmem:[%s155 + $0x1e30] sm:$0xff]
        %v1161 = vld [vmem:[%s155 + $0x1e38] sm:$0xff]
        %v1162 = vld [vmem:[%s155 + $0x1e40] sm:$0xff]
        %v1163 = vld [vmem:[%s155 + $0x1e48] sm:$0xff]
        %v1164 = vld [vmem:[%s155 + $0x1e50] sm:$0xff]
        %v1165 = vld [vmem:[%s155 + $0x1e58] sm:$0xff]
        %v1166 = vld [vmem:[%s155 + $0x1e60] sm:$0xff]
        %v1167 = vld [vmem:[%s155 + $0x1e68] sm:$0xff]
        %v1168 = vld [vmem:[%s155 + $0x1e70] sm:$0xff]
        %v1169 = vld [vmem:[%s155 + $0x1e78] sm:$0xff]
        %v1170 = vld [vmem:[%s155 + $0x1e80] sm:$0xff]
        %v1171 = vld [vmem:[%s155 + $0x1e88] sm:$0xff]
        %v1172 = vld [vmem:[%s155 + $0x1e90] sm:$0xff]
        %v1173 = vld [vmem:[%s155 + $0x1e98] sm:$0xff]
        %v1174 = vld [vmem:[%s155 + $0x1ea0] sm:$0xff]
        %v1175 = vld [vmem:[%s155 + $0x1ea8] sm:$0xff]
        %v1176 = vld [vmem:[%s155 + $0x1eb0] sm:$0xff]
        %v1177 = vld [vmem:[%s155 + $0x1eb8] sm:$0xff]
        %v1178 = vld [vmem:[%s155 + $0x1ec0] sm:$0xff]
        %v1179 = vld [vmem:[%s155 + $0x1ec8] sm:$0xff]
        %v1180 = vld [vmem:[%s155 + $0x1ed0] sm:$0xff]
        %v1181 = vld [vmem:[%s155 + $0x1ed8] sm:$0xff]
        %v1182 = vld [vmem:[%s155 + $0x1ee0] sm:$0xff]
        %v1183 = vld [vmem:[%s155 + $0x1ee8] sm:$0xff]
        %v1184 = vld [vmem:[%s155 + $0x1ef0] sm:$0xff]
        %v1185 = vld [vmem:[%s155 + $0x1ef8] sm:$0xff]
        %v1186 = vld [vmem:[%s155 + $0x1f00] sm:$0xff]
        %v1187 = vld [vmem:[%s155 + $0x1f08] sm:$0xff]
        %v1188 = vld [vmem:[%s155 + $0x1f10] sm:$0xff]
        %v1189 = vld [vmem:[%s155 + $0x1f18] sm:$0xff]
        %v1190 = vld [vmem:[%s155 + $0x1f20] sm:$0xff]
        %v1191 = vld [vmem:[%s155 + $0x1f28] sm:$0xff]
        %v1192 = vld [vmem:[%s155 + $0x1f30] sm:$0xff]
        %v1193 = vld [vmem:[%s155 + $0x1f38] sm:$0xff]
        %v1194 = vld [vmem:[%s155 + $0x1f40] sm:$0xff]
        %v1195 = vld [vmem:[%s155 + $0x1f48] sm:$0xff]
        %v1196 = vld [vmem:[%s155 + $0x1f50] sm:$0xff]
        %v1197 = vld [vmem:[%s155 + $0x1f58] sm:$0xff]
        %v1198 = vld [vmem:[%s155 + $0x1f60] sm:$0xff]
        %v1199 = vld [vmem:[%s155 + $0x1f68] sm:$0xff]
        %v1200 = vld [vmem:[%s155 + $0x1f70] sm:$0xff]
        %v1201 = vld [vmem:[%s155 + $0x1f78] sm:$0xff]
        %v1202 = vld [vmem:[%s155 + $0x1f80] sm:$0xff]
        %v1203 = vld [vmem:[%s155 + $0x1f88] sm:$0xff]
        %v1204 = vld [vmem:[%s155 + $0x1f90] sm:$0xff]
        %v1205 = vld [vmem:[%s155 + $0x1f98] sm:$0xff]
        %v1206 = vld [vmem:[%s155 + $0x1fa0] sm:$0xff]
        %v1207 = vld [vmem:[%s155 + $0x1fa8] sm:$0xff]
        %v1208 = vld [vmem:[%s155 + $0x1fb0] sm:$0xff]
        %v1209 = vld [vmem:[%s155 + $0x1fb8] sm:$0xff]
        %v1210 = vld [vmem:[%s155 + $0x1fc0] sm:$0xff]
        %v1211 = vld [vmem:[%s155 + $0x1fc8] sm:$0xff]
        %v1212 = vld [vmem:[%s155 + $0x1fd0] sm:$0xff]
        %v1213 = vld [vmem:[%s155 + $0x1fd8] sm:$0xff]
        %v1214 = vld [vmem:[%s155 + $0x1fe0] sm:$0xff]
        %v1215 = vld [vmem:[%s155 + $0x1fe8] sm:$0xff]
        %v1216 = vld [vmem:[%s155 + $0x1ff0] sm:$0xff]
        %v1217 = vld [vmem:[%s155 + $0x1ff8] sm:$0xff]
        %1218 = vmatprep.subr.mxu0 %v195
        %1219 = vmatpush1.xpose.msra.mxu0 %v194
        %1220 = vmatprep.subr.mxu0 %v211
        %1221 = vmatpush1.xpose.msra.mxu0 %v210
        %1222 = vmatprep.subr.mxu0 %v227
        %1223 = vmatpush1.xpose.msra.mxu0 %v226
        %1224 = vmatprep.subr.mxu0 %v243
        %1225 = vmatpush1.xpose.msra.mxu0 %v242
        %1226 = vmatprep.subr.mxu0 %v259
        %1227 = vmatpush1.xpose.msra.mxu0 %v258
        %1228 = vmatprep.subr.mxu0 %v275
        %1229 = vmatpush1.xpose.msra.mxu0 %v274
        %1230 = vmatprep.subr.mxu0 %v291
        %1231 = vmatpush1.xpose.msra.mxu0 %v290
        %1232 = vmatprep.subr.mxu0 %v307
        %1233 = vmatpush1.xpose.msra.mxu0 %v306
        %1234 = vmatprep.subr.mxu0 %v323
        %1235 = vmatpush1.xpose.msra.mxu0 %v322
        %1236 = vmatprep.subr.mxu0 %v339
        %1237 = vmatpush1.xpose.msra.mxu0 %v338
        %1238 = vmatprep.subr.mxu0 %v355
        %1239 = vmatpush1.xpose.msra.mxu0 %v354
        %1240 = vmatprep.subr.mxu0 %v371
        %1241 = vmatpush1.xpose.msra.mxu0 %v370
        %1242 = vmatprep.subr.mxu0 %v387
        %1243 = vmatpush1.xpose.msra.mxu0 %v386
        %1244 = vmatprep.subr.mxu0 %v403
        %1245 = vmatpush1.xpose.msra.mxu0 %v402
        %1246 = vmatprep.subr.mxu0 %v419
        %1247 = vmatpush1.xpose.msra.mxu0 %v418
        %1248 = vmatprep.subr.mxu0 %v435
        %1249 = vmatpush1.xpose.msra.mxu0 %v434
        %1250 = vmatprep.subr.mxu0 %v451
        %1251 = vmatpush1.xpose.msra.mxu0 %v450
        %1252 = vmatprep.subr.mxu0 %v467
        %1253 = vmatpush1.xpose.msra.mxu0 %v466
        %1254 = vmatprep.subr.mxu0 %v483
        %1255 = vmatpush1.xpose.msra.mxu0 %v482
        %1256 = vmatprep.subr.mxu0 %v499
        %1257 = vmatpush1.xpose.msra.mxu0 %v498
        %1258 = vmatprep.subr.mxu0 %v515
        %1259 = vmatpush1.xpose.msra.mxu0 %v514
        %1260 = vmatprep.subr.mxu0 %v531
        %1261 = vmatpush1.xpose.msra.mxu0 %v530
        %1262 = vmatprep.subr.mxu0 %v547
        %1263 = vmatpush1.xpose.msra.mxu0 %v546
        %1264 = vmatprep.subr.mxu0 %v563
        %1265 = vmatpush1.xpose.msra.mxu0 %v562
        %1266 = vmatprep.subr.mxu0 %v579
        %1267 = vmatpush1.xpose.msra.mxu0 %v578
        %1268 = vmatprep.subr.mxu0 %v595
        %1269 = vmatpush1.xpose.msra.mxu0 %v594
        %1270 = vmatprep.subr.mxu0 %v611
        %1271 = vmatpush1.xpose.msra.mxu0 %v610
        %1272 = vmatprep.subr.mxu0 %v627
        %1273 = vmatpush1.xpose.msra.mxu0 %v626
        %1274 = vmatprep.subr.mxu0 %v643
        %1275 = vmatpush1.xpose.msra.mxu0 %v642
        %1276 = vmatprep.subr.mxu0 %v659
        %1277 = vmatpush1.xpose.msra.mxu0 %v658
        %1278 = vmatprep.subr.mxu0 %v675
        %1279 = vmatpush1.xpose.msra.mxu0 %v674
        %1280 = vmatprep.subr.mxu0 %v691
        %1281 = vmatpush1.xpose.msra.mxu0 %v690
        %1282 = vmatprep.mubr.f32.mxu0 %v179
        %1283 = vmatmul.mubr.f32.gmra.mrb[0].mxu0 %v178
        %v1284 = vpop.f32.mrb[0].mxu0
        %v1285 = vadd.f32 0.0, %v1284
        %v1286 = vpop.f32.mrb[0].mxu0
        %v1287 = vadd.f32 0.0, %v1286
        %1288 = vdwg.mxu0
        %1289 = vmatprep.subr.mxu0 %v197
        %1290 = vmatpush1.xpose.msra.mxu0 %v196
        %1291 = vmatprep.subr.mxu0 %v213
        %1292 = vmatpush1.xpose.msra.mxu0 %v212
        %1293 = vmatprep.subr.mxu0 %v229
        %1294 = vmatpush1.xpose.msra.mxu0 %v228
        %1295 = vmatprep.subr.mxu0 %v245
        %1296 = vmatpush1.xpose.msra.mxu0 %v244
        %1297 = vmatprep.subr.mxu0 %v261
        %1298 = vmatpush1.xpose.msra.mxu0 %v260
        %1299 = vmatprep.subr.mxu0 %v277
        %1300 = vmatpush1.xpose.msra.mxu0 %v276
        %1301 = vmatprep.subr.mxu0 %v293
        %1302 = vmatpush1.xpose.msra.mxu0 %v292
        %1303 = vmatprep.subr.mxu0 %v309
        %1304 = vmatpush1.xpose.msra.mxu0 %v308
        %1305 = vmatprep.subr.mxu0 %v325
        %1306 = vmatpush1.xpose.msra.mxu0 %v324
        %1307 = vmatprep.subr.mxu0 %v341
        %1308 = vmatpush1.xpose.msra.mxu0 %v340
        %1309 = vmatprep.subr.mxu0 %v357
        %1310 = vmatpush1.xpose.msra.mxu0 %v356
        %1311 = vmatprep.subr.mxu0 %v373
        %1312 = vmatpush1.xpose.msra.mxu0 %v372
        %1313 = vmatprep.subr.mxu0 %v389
        %1314 = vmatpush1.xpose.msra.mxu0 %v388
        %1315 = vmatprep.subr.mxu0 %v405
        %1316 = vmatpush1.xpose.msra.mxu0 %v404
        %1317 = vmatprep.subr.mxu0 %v421
        %1318 = vmatpush1.xpose.msra.mxu0 %v420
        %1319 = vmatprep.subr.mxu0 %v437
        %1320 = vmatpush1.xpose.msra.mxu0 %v436
        %1321 = vmatprep.subr.mxu0 %v453
        %1322 = vmatpush1.xpose.msra.mxu0 %v452
        %1323 = vmatprep.subr.mxu0 %v469
        %1324 = vmatpush1.xpose.msra.mxu0 %v468
        %1325 = vmatprep.subr.mxu0 %v485
        %1326 = vmatpush1.xpose.msra.mxu0 %v484
        %1327 = vmatprep.subr.mxu0 %v501
        %1328 = vmatpush1.xpose.msra.mxu0 %v500
        %1329 = vmatprep.subr.mxu0 %v517
        %1330 = vmatpush1.xpose.msra.mxu0 %v516
        %1331 = vmatprep.subr.mxu0 %v533
        %1332 = vmatpush1.xpose.msra.mxu0 %v532
        %1333 = vmatprep.subr.mxu0 %v549
        %1334 = vmatpush1.xpose.msra.mxu0 %v548
        %1335 = vmatprep.subr.mxu0 %v565
        %1336 = vmatpush1.xpose.msra.mxu0 %v564
        %1337 = vmatprep.subr.mxu0 %v581
        %1338 = vmatpush1.xpose.msra.mxu0 %v580
        %1339 = vmatprep.subr.mxu0 %v597
        %1340 = vmatpush1.xpose.msra.mxu0 %v596
        %1341 = vmatprep.subr.mxu0 %v613
        %1342 = vmatpush1.xpose.msra.mxu0 %v612
        %1343 = vmatprep.subr.mxu0 %v629
        %1344 = vmatpush1.xpose.msra.mxu0 %v628
        %1345 = vmatprep.subr.mxu0 %v645
        %1346 = vmatpush1.xpose.msra.mxu0 %v644
        %1347 = vmatprep.subr.mxu0 %v661
        %1348 = vmatpush1.xpose.msra.mxu0 %v660
        %1349 = vmatprep.subr.mxu0 %v677
        %1350 = vmatpush1.xpose.msra.mxu0 %v676
        %1351 = vmatprep.subr.mxu0 %v693
        %1352 = vmatpush1.xpose.msra.mxu0 %v692
        %1353 = vmatprep.mubr.f32.mxu0 %v181
        %1354 = vmatmul.mubr.f32.gmra.mrb[0].mxu0 %v180
        %v1355 = vpop.f32.mrb[0].mxu0
        %v1356 = vadd.f32 %v1285, %v1355
        %v1357 = vpop.f32.mrb[0].mxu0
        %v1358 = vadd.f32 %v1287, %v1357
        %1359 = vdwg.mxu0
        %1360 = vmatprep.subr.mxu0 %v199
        %1361 = vmatpush1.xpose.msra.mxu0 %v198
        %1362 = vmatprep.subr.mxu0 %v215
        %1363 = vmatpush1.xpose.msra.mxu0 %v214
        %1364 = vmatprep.subr.mxu0 %v231
        %1365 = vmatpush1.xpose.msra.mxu0 %v230
        %1366 = vmatprep.subr.mxu0 %v247
        %1367 = vmatpush1.xpose.msra.mxu0 %v246
        %1368 = vmatprep.subr.mxu0 %v263
        %1369 = vmatpush1.xpose.msra.mxu0 %v262
        %1370 = vmatprep.subr.mxu0 %v279
        %1371 = vmatpush1.xpose.msra.mxu0 %v278
        %1372 = vmatprep.subr.mxu0 %v295
        %1373 = vmatpush1.xpose.msra.mxu0 %v294
        %1374 = vmatprep.subr.mxu0 %v311
        %1375 = vmatpush1.xpose.msra.mxu0 %v310
        %1376 = vmatprep.subr.mxu0 %v327
        %1377 = vmatpush1.xpose.msra.mxu0 %v326
        %1378 = vmatprep.subr.mxu0 %v343
        %1379 = vmatpush1.xpose.msra.mxu0 %v342
        %1380 = vmatprep.subr.mxu0 %v359
        %1381 = vmatpush1.xpose.msra.mxu0 %v358
        %1382 = vmatprep.subr.mxu0 %v375
        %1383 = vmatpush1.xpose.msra.mxu0 %v374
        %1384 = vmatprep.subr.mxu0 %v391
        %1385 = vmatpush1.xpose.msra.mxu0 %v390
        %1386 = vmatprep.subr.mxu0 %v407
        %1387 = vmatpush1.xpose.msra.mxu0 %v406
        %1388 = vmatprep.subr.mxu0 %v423
        %1389 = vmatpush1.xpose.msra.mxu0 %v422
        %1390 = vmatprep.subr.mxu0 %v439
        %1391 = vmatpush1.xpose.msra.mxu0 %v438
        %1392 = vmatprep.subr.mxu0 %v455
        %1393 = vmatpush1.xpose.msra.mxu0 %v454
        %1394 = vmatprep.subr.mxu0 %v471
        %1395 = vmatpush1.xpose.msra.mxu0 %v470
        %1396 = vmatprep.subr.mxu0 %v487
        %1397 = vmatpush1.xpose.msra.mxu0 %v486
        %1398 = vmatprep.subr.mxu0 %v503
        %1399 = vmatpush1.xpose.msra.mxu0 %v502
        %1400 = vmatprep.subr.mxu0 %v519
        %1401 = vmatpush1.xpose.msra.mxu0 %v518
        %1402 = vmatprep.subr.mxu0 %v535
        %1403 = vmatpush1.xpose.msra.mxu0 %v534
        %1404 = vmatprep.subr.mxu0 %v551
        %1405 = vmatpush1.xpose.msra.mxu0 %v550
        %1406 = vmatprep.subr.mxu0 %v567
        %1407 = vmatpush1.xpose.msra.mxu0 %v566
        %1408 = vmatprep.subr.mxu0 %v583
        %1409 = vmatpush1.xpose.msra.mxu0 %v582
        %1410 = vmatprep.subr.mxu0 %v599
        %1411 = vmatpush1.xpose.msra.mxu0 %v598
        %1412 = vmatprep.subr.mxu0 %v615
        %1413 = vmatpush1.xpose.msra.mxu0 %v614
        %1414 = vmatprep.subr.mxu0 %v631
        %1415 = vmatpush1.xpose.msra.mxu0 %v630
        %1416 = vmatprep.subr.mxu0 %v647
        %1417 = vmatpush1.xpose.msra.mxu0 %v646
        %1418 = vmatprep.subr.mxu0 %v663
        %1419 = vmatpush1.xpose.msra.mxu0 %v662
        %1420 = vmatprep.subr.mxu0 %v679
        %1421 = vmatpush1.xpose.msra.mxu0 %v678
        %1422 = vmatprep.subr.mxu0 %v695
        %1423 = vmatpush1.xpose.msra.mxu0 %v694
        %1424 = vmatprep.mubr.f32.mxu0 %v183
        %1425 = vmatmul.mubr.f32.gmra.mrb[0].mxu0 %v182
        %v1426 = vpop.f32.mrb[0].mxu0
        %v1427 = vadd.f32 %v1356, %v1426
        %v1428 = vpop.f32.mrb[0].mxu0
        %v1429 = vadd.f32 %v1358, %v1428
        %1430 = vdwg.mxu0
        %1431 = vmatprep.subr.mxu0 %v201
        %1432 = vmatpush1.xpose.msra.mxu0 %v200
        %1433 = vmatprep.subr.mxu0 %v217
        %1434 = vmatpush1.xpose.msra.mxu0 %v216
        %1435 = vmatprep.subr.mxu0 %v233
        %1436 = vmatpush1.xpose.msra.mxu0 %v232
        %1437 = vmatprep.subr.mxu0 %v249
        %1438 = vmatpush1.xpose.msra.mxu0 %v248
        %1439 = vmatprep.subr.mxu0 %v265
        %1440 = vmatpush1.xpose.msra.mxu0 %v264
        %1441 = vmatprep.subr.mxu0 %v281
        %1442 = vmatpush1.xpose.msra.mxu0 %v280
        %1443 = vmatprep.subr.mxu0 %v297
        %1444 = vmatpush1.xpose.msra.mxu0 %v296
        %1445 = vmatprep.subr.mxu0 %v313
        %1446 = vmatpush1.xpose.msra.mxu0 %v312
        %1447 = vmatprep.subr.mxu0 %v329
        %1448 = vmatpush1.xpose.msra.mxu0 %v328
        %1449 = vmatprep.subr.mxu0 %v345
        %1450 = vmatpush1.xpose.msra.mxu0 %v344
        %1451 = vmatprep.subr.mxu0 %v361
        %1452 = vmatpush1.xpose.msra.mxu0 %v360
        %1453 = vmatprep.subr.mxu0 %v377
        %1454 = vmatpush1.xpose.msra.mxu0 %v376
        %1455 = vmatprep.subr.mxu0 %v393
        %1456 = vmatpush1.xpose.msra.mxu0 %v392
        %1457 = vmatprep.subr.mxu0 %v409
        %1458 = vmatpush1.xpose.msra.mxu0 %v408
        %1459 = vmatprep.subr.mxu0 %v425
        %1460 = vmatpush1.xpose.msra.mxu0 %v424
        %1461 = vmatprep.subr.mxu0 %v441
        %1462 = vmatpush1.xpose.msra.mxu0 %v440
        %1463 = vmatprep.subr.mxu0 %v457
        %1464 = vmatpush1.xpose.msra.mxu0 %v456
        %1465 = vmatprep.subr.mxu0 %v473
        %1466 = vmatpush1.xpose.msra.mxu0 %v472
        %1467 = vmatprep.subr.mxu0 %v489
        %1468 = vmatpush1.xpose.msra.mxu0 %v488
        %1469 = vmatprep.subr.mxu0 %v505
        %1470 = vmatpush1.xpose.msra.mxu0 %v504
        %1471 = vmatprep.subr.mxu0 %v521
        %1472 = vmatpush1.xpose.msra.mxu0 %v520
        %1473 = vmatprep.subr.mxu0 %v537
        %1474 = vmatpush1.xpose.msra.mxu0 %v536
        %1475 = vmatprep.subr.mxu0 %v553
        %1476 = vmatpush1.xpose.msra.mxu0 %v552
        %1477 = vmatprep.subr.mxu0 %v569
        %1478 = vmatpush1.xpose.msra.mxu0 %v568
        %1479 = vmatprep.subr.mxu0 %v585
        %1480 = vmatpush1.xpose.msra.mxu0 %v584
        %1481 = vmatprep.subr.mxu0 %v601
        %1482 = vmatpush1.xpose.msra.mxu0 %v600
        %1483 = vmatprep.subr.mxu0 %v617
        %1484 = vmatpush1.xpose.msra.mxu0 %v616
        %1485 = vmatprep.subr.mxu0 %v633
        %1486 = vmatpush1.xpose.msra.mxu0 %v632
        %1487 = vmatprep.subr.mxu0 %v649
        %1488 = vmatpush1.xpose.msra.mxu0 %v648
        %1489 = vmatprep.subr.mxu0 %v665
        %1490 = vmatpush1.xpose.msra.mxu0 %v664
        %1491 = vmatprep.subr.mxu0 %v681
        %1492 = vmatpush1.xpose.msra.mxu0 %v680
        %1493 = vmatprep.subr.mxu0 %v697
        %1494 = vmatpush1.xpose.msra.mxu0 %v696
        %1495 = vmatprep.mubr.f32.mxu0 %v185
        %1496 = vmatmul.mubr.f32.gmra.mrb[0].mxu0 %v184
        %v1497 = vpop.f32.mrb[0].mxu0
        %v1498 = vadd.f32 %v1427, %v1497
        %v1499 = vpop.f32.mrb[0].mxu0
        %v1500 = vadd.f32 %v1429, %v1499
        %1501 = vdwg.mxu0
        %1502 = vmatprep.subr.mxu0 %v203
        %1503 = vmatpush1.xpose.msra.mxu0 %v202
        %1504 = vmatprep.subr.mxu0 %v219
        %1505 = vmatpush1.xpose.msra.mxu0 %v218
        %1506 = vmatprep.subr.mxu0 %v235
        %1507 = vmatpush1.xpose.msra.mxu0 %v234
        %1508 = vmatprep.subr.mxu0 %v251
        %1509 = vmatpush1.xpose.msra.mxu0 %v250
        %1510 = vmatprep.subr.mxu0 %v267
        %1511 = vmatpush1.xpose.msra.mxu0 %v266
        %1512 = vmatprep.subr.mxu0 %v283
        %1513 = vmatpush1.xpose.msra.mxu0 %v282
        %1514 = vmatprep.subr.mxu0 %v299
        %1515 = vmatpush1.xpose.msra.mxu0 %v298
        %1516 = vmatprep.subr.mxu0 %v315
        %1517 = vmatpush1.xpose.msra.mxu0 %v314
        %1518 = vmatprep.subr.mxu0 %v331
        %1519 = vmatpush1.xpose.msra.mxu0 %v330
        %1520 = vmatprep.subr.mxu0 %v347
        %1521 = vmatpush1.xpose.msra.mxu0 %v346
        %1522 = vmatprep.subr.mxu0 %v363
        %1523 = vmatpush1.xpose.msra.mxu0 %v362
        %1524 = vmatprep.subr.mxu0 %v379
        %1525 = vmatpush1.xpose.msra.mxu0 %v378
        %1526 = vmatprep.subr.mxu0 %v395
        %1527 = vmatpush1.xpose.msra.mxu0 %v394
        %1528 = vmatprep.subr.mxu0 %v411
        %1529 = vmatpush1.xpose.msra.mxu0 %v410
        %1530 = vmatprep.subr.mxu0 %v427
        %1531 = vmatpush1.xpose.msra.mxu0 %v426
        %1532 = vmatprep.subr.mxu0 %v443
        %1533 = vmatpush1.xpose.msra.mxu0 %v442
        %1534 = vmatprep.subr.mxu0 %v459
        %1535 = vmatpush1.xpose.msra.mxu0 %v458
        %1536 = vmatprep.subr.mxu0 %v475
        %1537 = vmatpush1.xpose.msra.mxu0 %v474
        %1538 = vmatprep.subr.mxu0 %v491
        %1539 = vmatpush1.xpose.msra.mxu0 %v490
        %1540 = vmatprep.subr.mxu0 %v507
        %1541 = vmatpush1.xpose.msra.mxu0 %v506
        %1542 = vmatprep.subr.mxu0 %v523
        %1543 = vmatpush1.xpose.msra.mxu0 %v522
        %1544 = vmatprep.subr.mxu0 %v539
        %1545 = vmatpush1.xpose.msra.mxu0 %v538
        %1546 = vmatprep.subr.mxu0 %v555
        %1547 = vmatpush1.xpose.msra.mxu0 %v554
        %1548 = vmatprep.subr.mxu0 %v571
        %1549 = vmatpush1.xpose.msra.mxu0 %v570
        %1550 = vmatprep.subr.mxu0 %v587
        %1551 = vmatpush1.xpose.msra.mxu0 %v586
        %1552 = vmatprep.subr.mxu0 %v603
        %1553 = vmatpush1.xpose.msra.mxu0 %v602
        %1554 = vmatprep.subr.mxu0 %v619
        %1555 = vmatpush1.xpose.msra.mxu0 %v618
        %1556 = vmatprep.subr.mxu0 %v635
        %1557 = vmatpush1.xpose.msra.mxu0 %v634
        %1558 = vmatprep.subr.mxu0 %v651
        %1559 = vmatpush1.xpose.msra.mxu0 %v650
        %1560 = vmatprep.subr.mxu0 %v667
        %1561 = vmatpush1.xpose.msra.mxu0 %v666
        %1562 = vmatprep.subr.mxu0 %v683
        %1563 = vmatpush1.xpose.msra.mxu0 %v682
        %1564 = vmatprep.subr.mxu0 %v699
        %1565 = vmatpush1.xpose.msra.mxu0 %v698
        %1566 = vmatprep.mubr.f32.mxu0 %v187
        %1567 = vmatmul.mubr.f32.gmra.mrb[0].mxu0 %v186
        %v1568 = vpop.f32.mrb[0].mxu0
        %v1569 = vadd.f32 %v1498, %v1568
        %v1570 = vpop.f32.mrb[0].mxu0
        %v1571 = vadd.f32 %v1500, %v1570
        %1572 = vdwg.mxu0
        %1573 = vmatprep.subr.mxu0 %v205
        %1574 = vmatpush1.xpose.msra.mxu0 %v204
        %1575 = vmatprep.subr.mxu0 %v221
        %1576 = vmatpush1.xpose.msra.mxu0 %v220
        %1577 = vmatprep.subr.mxu0 %v237
        %1578 = vmatpush1.xpose.msra.mxu0 %v236
        %1579 = vmatprep.subr.mxu0 %v253
        %1580 = vmatpush1.xpose.msra.mxu0 %v252
        %1581 = vmatprep.subr.mxu0 %v269
        %1582 = vmatpush1.xpose.msra.mxu0 %v268
        %1583 = vmatprep.subr.mxu0 %v285
        %1584 = vmatpush1.xpose.msra.mxu0 %v284
        %1585 = vmatprep.subr.mxu0 %v301
        %1586 = vmatpush1.xpose.msra.mxu0 %v300
        %1587 = vmatprep.subr.mxu0 %v317
        %1588 = vmatpush1.xpose.msra.mxu0 %v316
        %1589 = vmatprep.subr.mxu0 %v333
        %1590 = vmatpush1.xpose.msra.mxu0 %v332
        %1591 = vmatprep.subr.mxu0 %v349
        %1592 = vmatpush1.xpose.msra.mxu0 %v348
        %1593 = vmatprep.subr.mxu0 %v365
        %1594 = vmatpush1.xpose.msra.mxu0 %v364
        %1595 = vmatprep.subr.mxu0 %v381
        %1596 = vmatpush1.xpose.msra.mxu0 %v380
        %1597 = vmatprep.subr.mxu0 %v397
        %1598 = vmatpush1.xpose.msra.mxu0 %v396
        %1599 = vmatprep.subr.mxu0 %v413
        %1600 = vmatpush1.xpose.msra.mxu0 %v412
        %1601 = vmatprep.subr.mxu0 %v429
        %1602 = vmatpush1.xpose.msra.mxu0 %v428
        %1603 = vmatprep.subr.mxu0 %v445
        %1604 = vmatpush1.xpose.msra.mxu0 %v444
        %1605 = vmatprep.subr.mxu0 %v461
        %1606 = vmatpush1.xpose.msra.mxu0 %v460
        %1607 = vmatprep.subr.mxu0 %v477
        %1608 = vmatpush1.xpose.msra.mxu0 %v476
        %1609 = vmatprep.subr.mxu0 %v493
        %1610 = vmatpush1.xpose.msra.mxu0 %v492
        %1611 = vmatprep.subr.mxu0 %v509
        %1612 = vmatpush1.xpose.msra.mxu0 %v508
        %1613 = vmatprep.subr.mxu0 %v525
        %1614 = vmatpush1.xpose.msra.mxu0 %v524
        %1615 = vmatprep.subr.mxu0 %v541
        %1616 = vmatpush1.xpose.msra.mxu0 %v540
        %1617 = vmatprep.subr.mxu0 %v557
        %1618 = vmatpush1.xpose.msra.mxu0 %v556
        %1619 = vmatprep.subr.mxu0 %v573
        %1620 = vmatpush1.xpose.msra.mxu0 %v572
        %1621 = vmatprep.subr.mxu0 %v589
        %1622 = vmatpush1.xpose.msra.mxu0 %v588
        %1623 = vmatprep.subr.mxu0 %v605
        %1624 = vmatpush1.xpose.msra.mxu0 %v604
        %1625 = vmatprep.subr.mxu0 %v621
        %1626 = vmatpush1.xpose.msra.mxu0 %v620
        %1627 = vmatprep.subr.mxu0 %v637
        %1628 = vmatpush1.xpose.msra.mxu0 %v636
        %1629 = vmatprep.subr.mxu0 %v653
        %1630 = vmatpush1.xpose.msra.mxu0 %v652
        %1631 = vmatprep.subr.mxu0 %v669
        %1632 = vmatpush1.xpose.msra.mxu0 %v668
        %1633 = vmatprep.subr.mxu0 %v685
        %1634 = vmatpush1.xpose.msra.mxu0 %v684
        %1635 = vmatprep.subr.mxu0 %v701
        %1636 = vmatpush1.xpose.msra.mxu0 %v700
        %1637 = vmatprep.mubr.f32.mxu0 %v189
        %1638 = vmatmul.mubr.f32.gmra.mrb[0].mxu0 %v188
        %v1639 = vpop.f32.mrb[0].mxu0
        %v1640 = vadd.f32 %v1569, %v1639
        %v1641 = vpop.f32.mrb[0].mxu0
        %v1642 = vadd.f32 %v1571, %v1641
        %1643 = vdwg.mxu0
        %1644 = vmatprep.subr.mxu0 %v207
        %1645 = vmatpush1.xpose.msra.mxu0 %v206
        %1646 = vmatprep.subr.mxu0 %v223
        %1647 = vmatpush1.xpose.msra.mxu0 %v222
        %1648 = vmatprep.subr.mxu0 %v239
        %1649 = vmatpush1.xpose.msra.mxu0 %v238
        %1650 = vmatprep.subr.mxu0 %v255
        %1651 = vmatpush1.xpose.msra.mxu0 %v254
        %1652 = vmatprep.subr.mxu0 %v271
        %1653 = vmatpush1.xpose.msra.mxu0 %v270
        %1654 = vmatprep.subr.mxu0 %v287
        %1655 = vmatpush1.xpose.msra.mxu0 %v286
        %1656 = vmatprep.subr.mxu0 %v303
        %1657 = vmatpush1.xpose.msra.mxu0 %v302
        %1658 = vmatprep.subr.mxu0 %v319
        %1659 = vmatpush1.xpose.msra.mxu0 %v318
        %1660 = vmatprep.subr.mxu0 %v335
        %1661 = vmatpush1.xpose.msra.mxu0 %v334
        %1662 = vmatprep.subr.mxu0 %v351
        %1663 = vmatpush1.xpose.msra.mxu0 %v350
        %1664 = vmatprep.subr.mxu0 %v367
        %1665 = vmatpush1.xpose.msra.mxu0 %v366
        %1666 = vmatprep.subr.mxu0 %v383
        %1667 = vmatpush1.xpose.msra.mxu0 %v382
        %1668 = vmatprep.subr.mxu0 %v399
        %1669 = vmatpush1.xpose.msra.mxu0 %v398
        %1670 = vmatprep.subr.mxu0 %v415
        %1671 = vmatpush1.xpose.msra.mxu0 %v414
        %1672 = vmatprep.subr.mxu0 %v431
        %1673 = vmatpush1.xpose.msra.mxu0 %v430
        %1674 = vmatprep.subr.mxu0 %v447
        %1675 = vmatpush1.xpose.msra.mxu0 %v446
        %1676 = vmatprep.subr.mxu0 %v463
        %1677 = vmatpush1.xpose.msra.mxu0 %v462
        %1678 = vmatprep.subr.mxu0 %v479
        %1679 = vmatpush1.xpose.msra.mxu0 %v478
        %1680 = vmatprep.subr.mxu0 %v495
        %1681 = vmatpush1.xpose.msra.mxu0 %v494
        %1682 = vmatprep.subr.mxu0 %v511
        %1683 = vmatpush1.xpose.msra.mxu0 %v510
        %1684 = vmatprep.subr.mxu0 %v527
        %1685 = vmatpush1.xpose.msra.mxu0 %v526
        %1686 = vmatprep.subr.mxu0 %v543
        %1687 = vmatpush1.xpose.msra.mxu0 %v542
        %1688 = vmatprep.subr.mxu0 %v559
        %1689 = vmatpush1.xpose.msra.mxu0 %v558
        %1690 = vmatprep.subr.mxu0 %v575
        %1691 = vmatpush1.xpose.msra.mxu0 %v574
        %1692 = vmatprep.subr.mxu0 %v591
        %1693 = vmatpush1.xpose.msra.mxu0 %v590
        %1694 = vmatprep.subr.mxu0 %v607
        %1695 = vmatpush1.xpose.msra.mxu0 %v606
        %1696 = vmatprep.subr.mxu0 %v623
        %1697 = vmatpush1.xpose.msra.mxu0 %v622
        %1698 = vmatprep.subr.mxu0 %v639
        %1699 = vmatpush1.xpose.msra.mxu0 %v638
        %1700 = vmatprep.subr.mxu0 %v655
        %1701 = vmatpush1.xpose.msra.mxu0 %v654
        %1702 = vmatprep.subr.mxu0 %v671
        %1703 = vmatpush1.xpose.msra.mxu0 %v670
        %1704 = vmatprep.subr.mxu0 %v687
        %1705 = vmatpush1.xpose.msra.mxu0 %v686
        %1706 = vmatprep.subr.mxu0 %v703
        %1707 = vmatpush1.xpose.msra.mxu0 %v702
        %1708 = vmatprep.mubr.f32.mxu0 %v191
        %1709 = vmatmul.mubr.f32.gmra.mrb[0].mxu0 %v190
        %v1710 = vpop.f32.mrb[0].mxu0
        %v1711 = vadd.f32 %v1640, %v1710
        %v1712 = vpop.f32.mrb[0].mxu0
        %v1713 = vadd.f32 %v1642, %v1712
        %1714 = vdwg.mxu0
        %1715 = vmatprep.subr.mxu0 %v209
        %1716 = vmatpush1.xpose.msra.mxu0 %v208
        %1717 = vmatprep.subr.mxu0 %v225
        %1718 = vmatpush1.xpose.msra.mxu0 %v224
        %1719 = vmatprep.subr.mxu0 %v241
        %1720 = vmatpush1.xpose.msra.mxu0 %v240
        %1721 = vmatprep.subr.mxu0 %v257
        %1722 = vmatpush1.xpose.msra.mxu0 %v256
        %1723 = vmatprep.subr.mxu0 %v273
        %1724 = vmatpush1.xpose.msra.mxu0 %v272
        %1725 = vmatprep.subr.mxu0 %v289
        %1726 = vmatpush1.xpose.msra.mxu0 %v288
        %1727 = vmatprep.subr.mxu0 %v305
        %1728 = vmatpush1.xpose.msra.mxu0 %v304
        %1729 = vmatprep.subr.mxu0 %v321
        %1730 = vmatpush1.xpose.msra.mxu0 %v320
        %1731 = vmatprep.subr.mxu0 %v337
        %1732 = vmatpush1.xpose.msra.mxu0 %v336
        %1733 = vmatprep.subr.mxu0 %v353
        %1734 = vmatpush1.xpose.msra.mxu0 %v352
        %1735 = vmatprep.subr.mxu0 %v369
        %1736 = vmatpush1.xpose.msra.mxu0 %v368
        %1737 = vmatprep.subr.mxu0 %v385
        %1738 = vmatpush1.xpose.msra.mxu0 %v384
        %1739 = vmatprep.subr.mxu0 %v401
        %1740 = vmatpush1.xpose.msra.mxu0 %v400
        %1741 = vmatprep.subr.mxu0 %v417
        %1742 = vmatpush1.xpose.msra.mxu0 %v416
        %1743 = vmatprep.subr.mxu0 %v433
        %1744 = vmatpush1.xpose.msra.mxu0 %v432
        %1745 = vmatprep.subr.mxu0 %v449
        %1746 = vmatpush1.xpose.msra.mxu0 %v448
        %1747 = vmatprep.subr.mxu0 %v465
        %1748 = vmatpush1.xpose.msra.mxu0 %v464
        %1749 = vmatprep.subr.mxu0 %v481
        %1750 = vmatpush1.xpose.msra.mxu0 %v480
        %1751 = vmatprep.subr.mxu0 %v497
        %1752 = vmatpush1.xpose.msra.mxu0 %v496
        %1753 = vmatprep.subr.mxu0 %v513
        %1754 = vmatpush1.xpose.msra.mxu0 %v512
        %1755 = vmatprep.subr.mxu0 %v529
        %1756 = vmatpush1.xpose.msra.mxu0 %v528
        %1757 = vmatprep.subr.mxu0 %v545
        %1758 = vmatpush1.xpose.msra.mxu0 %v544
        %1759 = vmatprep.subr.mxu0 %v561
        %1760 = vmatpush1.xpose.msra.mxu0 %v560
        %1761 = vmatprep.subr.mxu0 %v577
        %1762 = vmatpush1.xpose.msra.mxu0 %v576
        %1763 = vmatprep.subr.mxu0 %v593
        %1764 = vmatpush1.xpose.msra.mxu0 %v592
        %1765 = vmatprep.subr.mxu0 %v609
        %1766 = vmatpush1.xpose.msra.mxu0 %v608
        %1767 = vmatprep.subr.mxu0 %v625
        %1768 = vmatpush1.xpose.msra.mxu0 %v624
        %1769 = vmatprep.subr.mxu0 %v641
        %1770 = vmatpush1.xpose.msra.mxu0 %v640
        %1771 = vmatprep.subr.mxu0 %v657
        %1772 = vmatpush1.xpose.msra.mxu0 %v656
        %1773 = vmatprep.subr.mxu0 %v673
        %1774 = vmatpush1.xpose.msra.mxu0 %v672
        %1775 = vmatprep.subr.mxu0 %v689
        %1776 = vmatpush1.xpose.msra.mxu0 %v688
        %1777 = vmatprep.subr.mxu0 %v705
        %1778 = vmatpush1.xpose.msra.mxu0 %v704
        %1779 = vmatprep.mubr.f32.mxu0 %v193
        %1780 = vmatmul.mubr.f32.gmra.mrb[0].mxu0 %v192
        %v1781 = vpop.f32.mrb[0].mxu0
        %v1782 = vadd.f32 %v1711, %v1781
        %v1783 = vpop.f32.mrb[0].mxu0
        %v1784 = vadd.f32 %v1713, %v1783
        %1785 = vdwg.mxu0
        %1786 = vmatprep.subr.mxu0 %v707
        %1787 = vmatpush1.xpose.msra.mxu0 %v706
        %1788 = vmatprep.subr.mxu0 %v723
        %1789 = vmatpush1.xpose.msra.mxu0 %v722
        %1790 = vmatprep.subr.mxu0 %v739
        %1791 = vmatpush1.xpose.msra.mxu0 %v738
        %1792 = vmatprep.subr.mxu0 %v755
        %1793 = vmatpush1.xpose.msra.mxu0 %v754
        %1794 = vmatprep.subr.mxu0 %v771
        %1795 = vmatpush1.xpose.msra.mxu0 %v770
        %1796 = vmatprep.subr.mxu0 %v787
        %1797 = vmatpush1.xpose.msra.mxu0 %v786
        %1798 = vmatprep.subr.mxu0 %v803
        %1799 = vmatpush1.xpose.msra.mxu0 %v802
        %1800 = vmatprep.subr.mxu0 %v819
        %1801 = vmatpush1.xpose.msra.mxu0 %v818
        %1802 = vmatprep.subr.mxu0 %v835
        %1803 = vmatpush1.xpose.msra.mxu0 %v834
        %1804 = vmatprep.subr.mxu0 %v851
        %1805 = vmatpush1.xpose.msra.mxu0 %v850
        %1806 = vmatprep.subr.mxu0 %v867
        %1807 = vmatpush1.xpose.msra.mxu0 %v866
        %1808 = vmatprep.subr.mxu0 %v883
        %1809 = vmatpush1.xpose.msra.mxu0 %v882
        %1810 = vmatprep.subr.mxu0 %v899
        %1811 = vmatpush1.xpose.msra.mxu0 %v898
        %1812 = vmatprep.subr.mxu0 %v915
        %1813 = vmatpush1.xpose.msra.mxu0 %v914
        %1814 = vmatprep.subr.mxu0 %v931
        %1815 = vmatpush1.xpose.msra.mxu0 %v930
        %1816 = vmatprep.subr.mxu0 %v947
        %1817 = vmatpush1.xpose.msra.mxu0 %v946
        %1818 = vmatprep.subr.mxu0 %v963
        %1819 = vmatpush1.xpose.msra.mxu0 %v962
        %1820 = vmatprep.subr.mxu0 %v979
        %1821 = vmatpush1.xpose.msra.mxu0 %v978
        %1822 = vmatprep.subr.mxu0 %v995
        %1823 = vmatpush1.xpose.msra.mxu0 %v994
        %1824 = vmatprep.subr.mxu0 %v1011
        %1825 = vmatpush1.xpose.msra.mxu0 %v1010
        %1826 = vmatprep.subr.mxu0 %v1027
        %1827 = vmatpush1.xpose.msra.mxu0 %v1026
        %1828 = vmatprep.subr.mxu0 %v1043
        %1829 = vmatpush1.xpose.msra.mxu0 %v1042
        %1830 = vmatprep.subr.mxu0 %v1059
        %1831 = vmatpush1.xpose.msra.mxu0 %v1058
        %1832 = vmatprep.subr.mxu0 %v1075
        %1833 = vmatpush1.xpose.msra.mxu0 %v1074
        %1834 = vmatprep.subr.mxu0 %v1091
        %1835 = vmatpush1.xpose.msra.mxu0 %v1090
        %1836 = vmatprep.subr.mxu0 %v1107
        %1837 = vmatpush1.xpose.msra.mxu0 %v1106
        %1838 = vmatprep.subr.mxu0 %v1123
        %1839 = vmatpush1.xpose.msra.mxu0 %v1122
        %1840 = vmatprep.subr.mxu0 %v1139
        %1841 = vmatpush1.xpose.msra.mxu0 %v1138
        %1842 = vmatprep.subr.mxu0 %v1155
        %1843 = vmatpush1.xpose.msra.mxu0 %v1154
        %1844 = vmatprep.subr.mxu0 %v1171
        %1845 = vmatpush1.xpose.msra.mxu0 %v1170
        %1846 = vmatprep.subr.mxu0 %v1187
        %1847 = vmatpush1.xpose.msra.mxu0 %v1186
        %1848 = vmatprep.subr.mxu0 %v1203
        %1849 = vmatpush1.xpose.msra.mxu0 %v1202
        %1850 = vmatprep.mubr.f32.mxu0 %v179
        %1851 = vmatmul.mubr.f32.gmra.mrb[0].mxu0 %v178
        %v1852 = vpop.f32.mrb[0].mxu0
        %v1853 = vadd.f32 0.0, %v1852
        %v1854 = vpop.f32.mrb[0].mxu0
        %v1855 = vadd.f32 0.0, %v1854
        %1856 = vdwg.mxu0
        %1857 = vmatprep.subr.mxu0 %v709
        %1858 = vmatpush1.xpose.msra.mxu0 %v708
        %1859 = vmatprep.subr.mxu0 %v725
        %1860 = vmatpush1.xpose.msra.mxu0 %v724
        %1861 = vmatprep.subr.mxu0 %v741
        %1862 = vmatpush1.xpose.msra.mxu0 %v740
        %1863 = vmatprep.subr.mxu0 %v757
        %1864 = vmatpush1.xpose.msra.mxu0 %v756
        %1865 = vmatprep.subr.mxu0 %v773
        %1866 = vmatpush1.xpose.msra.mxu0 %v772
        %1867 = vmatprep.subr.mxu0 %v789
        %1868 = vmatpush1.xpose.msra.mxu0 %v788
        %1869 = vmatprep.subr.mxu0 %v805
        %1870 = vmatpush1.xpose.msra.mxu0 %v804
        %1871 = vmatprep.subr.mxu0 %v821
        %1872 = vmatpush1.xpose.msra.mxu0 %v820
        %1873 = vmatprep.subr.mxu0 %v837
        %1874 = vmatpush1.xpose.msra.mxu0 %v836
        %1875 = vmatprep.subr.mxu0 %v853
        %1876 = vmatpush1.xpose.msra.mxu0 %v852
        %1877 = vmatprep.subr.mxu0 %v869
        %1878 = vmatpush1.xpose.msra.mxu0 %v868
        %1879 = vmatprep.subr.mxu0 %v885
        %1880 = vmatpush1.xpose.msra.mxu0 %v884
        %1881 = vmatprep.subr.mxu0 %v901
        %1882 = vmatpush1.xpose.msra.mxu0 %v900
        %1883 = vmatprep.subr.mxu0 %v917
        %1884 = vmatpush1.xpose.msra.mxu0 %v916
        %1885 = vmatprep.subr.mxu0 %v933
        %1886 = vmatpush1.xpose.msra.mxu0 %v932
        %1887 = vmatprep.subr.mxu0 %v949
        %1888 = vmatpush1.xpose.msra.mxu0 %v948
        %1889 = vmatprep.subr.mxu0 %v965
        %1890 = vmatpush1.xpose.msra.mxu0 %v964
        %1891 = vmatprep.subr.mxu0 %v981
        %1892 = vmatpush1.xpose.msra.mxu0 %v980
        %1893 = vmatprep.subr.mxu0 %v997
        %1894 = vmatpush1.xpose.msra.mxu0 %v996
        %1895 = vmatprep.subr.mxu0 %v1013
        %1896 = vmatpush1.xpose.msra.mxu0 %v1012
        %1897 = vmatprep.subr.mxu0 %v1029
        %1898 = vmatpush1.xpose.msra.mxu0 %v1028
        %1899 = vmatprep.subr.mxu0 %v1045
        %1900 = vmatpush1.xpose.msra.mxu0 %v1044
        %1901 = vmatprep.subr.mxu0 %v1061
        %1902 = vmatpush1.xpose.msra.mxu0 %v1060
        %1903 = vmatprep.subr.mxu0 %v1077
        %1904 = vmatpush1.xpose.msra.mxu0 %v1076
        %1905 = vmatprep.subr.mxu0 %v1093
        %1906 = vmatpush1.xpose.msra.mxu0 %v1092
        %1907 = vmatprep.subr.mxu0 %v1109
        %1908 = vmatpush1.xpose.msra.mxu0 %v1108
        %1909 = vmatprep.subr.mxu0 %v1125
        %1910 = vmatpush1.xpose.msra.mxu0 %v1124
        %1911 = vmatprep.subr.mxu0 %v1141
        %1912 = vmatpush1.xpose.msra.mxu0 %v1140
        %1913 = vmatprep.subr.mxu0 %v1157
        %1914 = vmatpush1.xpose.msra.mxu0 %v1156
        %1915 = vmatprep.subr.mxu0 %v1173
        %1916 = vmatpush1.xpose.msra.mxu0 %v1172
        %1917 = vmatprep.subr.mxu0 %v1189
        %1918 = vmatpush1.xpose.msra.mxu0 %v1188
        %1919 = vmatprep.subr.mxu0 %v1205
        %1920 = vmatpush1.xpose.msra.mxu0 %v1204
        %1921 = vmatprep.mubr.f32.mxu0 %v181
        %1922 = vmatmul.mubr.f32.gmra.mrb[0].mxu0 %v180
        %v1923 = vpop.f32.mrb[0].mxu0
        %v1924 = vadd.f32 %v1853, %v1923
        %v1925 = vpop.f32.mrb[0].mxu0
        %v1926 = vadd.f32 %v1855, %v1925
        %1927 = vdwg.mxu0
        %1928 = vmatprep.subr.mxu0 %v711
        %1929 = vmatpush1.xpose.msra.mxu0 %v710
        %1930 = vmatprep.subr.mxu0 %v727
        %1931 = vmatpush1.xpose.msra.mxu0 %v726
        %1932 = vmatprep.subr.mxu0 %v743
        %1933 = vmatpush1.xpose.msra.mxu0 %v742
        %1934 = vmatprep.subr.mxu0 %v759
        %1935 = vmatpush1.xpose.msra.mxu0 %v758
        %1936 = vmatprep.subr.mxu0 %v775
        %1937 = vmatpush1.xpose.msra.mxu0 %v774
        %1938 = vmatprep.subr.mxu0 %v791
        %1939 = vmatpush1.xpose.msra.mxu0 %v790
        %1940 = vmatprep.subr.mxu0 %v807
        %1941 = vmatpush1.xpose.msra.mxu0 %v806
        %1942 = vmatprep.subr.mxu0 %v823
        %1943 = vmatpush1.xpose.msra.mxu0 %v822
        %1944 = vmatprep.subr.mxu0 %v839
        %1945 = vmatpush1.xpose.msra.mxu0 %v838
        %1946 = vmatprep.subr.mxu0 %v855
        %1947 = vmatpush1.xpose.msra.mxu0 %v854
        %1948 = vmatprep.subr.mxu0 %v871
        %1949 = vmatpush1.xpose.msra.mxu0 %v870
        %1950 = vmatprep.subr.mxu0 %v887
        %1951 = vmatpush1.xpose.msra.mxu0 %v886
        %1952 = vmatprep.subr.mxu0 %v903
        %1953 = vmatpush1.xpose.msra.mxu0 %v902
        %1954 = vmatprep.subr.mxu0 %v919
        %1955 = vmatpush1.xpose.msra.mxu0 %v918
        %1956 = vmatprep.subr.mxu0 %v935
        %1957 = vmatpush1.xpose.msra.mxu0 %v934
        %1958 = vmatprep.subr.mxu0 %v951
        %1959 = vmatpush1.xpose.msra.mxu0 %v950
        %1960 = vmatprep.subr.mxu0 %v967
        %1961 = vmatpush1.xpose.msra.mxu0 %v966
        %1962 = vmatprep.subr.mxu0 %v983
        %1963 = vmatpush1.xpose.msra.mxu0 %v982
        %1964 = vmatprep.subr.mxu0 %v999
        %1965 = vmatpush1.xpose.msra.mxu0 %v998
        %1966 = vmatprep.subr.mxu0 %v1015
        %1967 = vmatpush1.xpose.msra.mxu0 %v1014
        %1968 = vmatprep.subr.mxu0 %v1031
        %1969 = vmatpush1.xpose.msra.mxu0 %v1030
        %1970 = vmatprep.subr.mxu0 %v1047
        %1971 = vmatpush1.xpose.msra.mxu0 %v1046
        %1972 = vmatprep.subr.mxu0 %v1063
        %1973 = vmatpush1.xpose.msra.mxu0 %v1062
        %1974 = vmatprep.subr.mxu0 %v1079
        %1975 = vmatpush1.xpose.msra.mxu0 %v1078
        %1976 = vmatprep.subr.mxu0 %v1095
        %1977 = vmatpush1.xpose.msra.mxu0 %v1094
        %1978 = vmatprep.subr.mxu0 %v1111
        %1979 = vmatpush1.xpose.msra.mxu0 %v1110
        %1980 = vmatprep.subr.mxu0 %v1127
        %1981 = vmatpush1.xpose.msra.mxu0 %v1126
        %1982 = vmatprep.subr.mxu0 %v1143
        %1983 = vmatpush1.xpose.msra.mxu0 %v1142
        %1984 = vmatprep.subr.mxu0 %v1159
        %1985 = vmatpush1.xpose.msra.mxu0 %v1158
        %1986 = vmatprep.subr.mxu0 %v1175
        %1987 = vmatpush1.xpose.msra.mxu0 %v1174
        %1988 = vmatprep.subr.mxu0 %v1191
        %1989 = vmatpush1.xpose.msra.mxu0 %v1190
        %1990 = vmatprep.subr.mxu0 %v1207
        %1991 = vmatpush1.xpose.msra.mxu0 %v1206
        %1992 = vmatprep.mubr.f32.mxu0 %v183
        %1993 = vmatmul.mubr.f32.gmra.mrb[0].mxu0 %v182
        %v1994 = vpop.f32.mrb[0].mxu0
        %v1995 = vadd.f32 %v1924, %v1994
        %v1996 = vpop.f32.mrb[0].mxu0
        %v1997 = vadd.f32 %v1926, %v1996
        %1998 = vdwg.mxu0
        %1999 = vmatprep.subr.mxu0 %v713
        %2000 = vmatpush1.xpose.msra.mxu0 %v712
        %2001 = vmatprep.subr.mxu0 %v729
        %2002 = vmatpush1.xpose.msra.mxu0 %v728
        %2003 = vmatprep.subr.mxu0 %v745
        %2004 = vmatpush1.xpose.msra.mxu0 %v744
        %2005 = vmatprep.subr.mxu0 %v761
        %2006 = vmatpush1.xpose.msra.mxu0 %v760
        %2007 = vmatprep.subr.mxu0 %v777
        %2008 = vmatpush1.xpose.msra.mxu0 %v776
        %2009 = vmatprep.subr.mxu0 %v793
        %2010 = vmatpush1.xpose.msra.mxu0 %v792
        %2011 = vmatprep.subr.mxu0 %v809
        %2012 = vmatpush1.xpose.msra.mxu0 %v808
        %2013 = vmatprep.subr.mxu0 %v825
        %2014 = vmatpush1.xpose.msra.mxu0 %v824
        %2015 = vmatprep.subr.mxu0 %v841
        %2016 = vmatpush1.xpose.msra.mxu0 %v840
        %2017 = vmatprep.subr.mxu0 %v857
        %2018 = vmatpush1.xpose.msra.mxu0 %v856
        %2019 = vmatprep.subr.mxu0 %v873
        %2020 = vmatpush1.xpose.msra.mxu0 %v872
        %2021 = vmatprep.subr.mxu0 %v889
        %2022 = vmatpush1.xpose.msra.mxu0 %v888
        %2023 = vmatprep.subr.mxu0 %v905
        %2024 = vmatpush1.xpose.msra.mxu0 %v904
        %2025 = vmatprep.subr.mxu0 %v921
        %2026 = vmatpush1.xpose.msra.mxu0 %v920
        %2027 = vmatprep.subr.mxu0 %v937
        %2028 = vmatpush1.xpose.msra.mxu0 %v936
        %2029 = vmatprep.subr.mxu0 %v953
        %2030 = vmatpush1.xpose.msra.mxu0 %v952
        %2031 = vmatprep.subr.mxu0 %v969
        %2032 = vmatpush1.xpose.msra.mxu0 %v968
        %2033 = vmatprep.subr.mxu0 %v985
        %2034 = vmatpush1.xpose.msra.mxu0 %v984
        %2035 = vmatprep.subr.mxu0 %v1001
        %2036 = vmatpush1.xpose.msra.mxu0 %v1000
        %2037 = vmatprep.subr.mxu0 %v1017
        %2038 = vmatpush1.xpose.msra.mxu0 %v1016
        %2039 = vmatprep.subr.mxu0 %v1033
        %2040 = vmatpush1.xpose.msra.mxu0 %v1032
        %2041 = vmatprep.subr.mxu0 %v1049
        %2042 = vmatpush1.xpose.msra.mxu0 %v1048
        %2043 = vmatprep.subr.mxu0 %v1065
        %2044 = vmatpush1.xpose.msra.mxu0 %v1064
        %2045 = vmatprep.subr.mxu0 %v1081
        %2046 = vmatpush1.xpose.msra.mxu0 %v1080
        %2047 = vmatprep.subr.mxu0 %v1097
        %2048 = vmatpush1.xpose.msra.mxu0 %v1096
        %2049 = vmatprep.subr.mxu0 %v1113
        %2050 = vmatpush1.xpose.msra.mxu0 %v1112
        %2051 = vmatprep.subr.mxu0 %v1129
        %2052 = vmatpush1.xpose.msra.mxu0 %v1128
        %2053 = vmatprep.subr.mxu0 %v1145
        %2054 = vmatpush1.xpose.msra.mxu0 %v1144
        %2055 = vmatprep.subr.mxu0 %v1161
        %2056 = vmatpush1.xpose.msra.mxu0 %v1160
        %2057 = vmatprep.subr.mxu0 %v1177
        %2058 = vmatpush1.xpose.msra.mxu0 %v1176
        %2059 = vmatprep.subr.mxu0 %v1193
        %2060 = vmatpush1.xpose.msra.mxu0 %v1192
        %2061 = vmatprep.subr.mxu0 %v1209
        %2062 = vmatpush1.xpose.msra.mxu0 %v1208
        %2063 = vmatprep.mubr.f32.mxu0 %v185
        %2064 = vmatmul.mubr.f32.gmra.mrb[0].mxu0 %v184
        %v2065 = vpop.f32.mrb[0].mxu0
        %v2066 = vadd.f32 %v1995, %v2065
        %v2067 = vpop.f32.mrb[0].mxu0
        %v2068 = vadd.f32 %v1997, %v2067
        %2069 = vdwg.mxu0
        %2070 = vmatprep.subr.mxu0 %v715
        %2071 = vmatpush1.xpose.msra.mxu0 %v714
        %2072 = vmatprep.subr.mxu0 %v731
        %2073 = vmatpush1.xpose.msra.mxu0 %v730
        %2074 = vmatprep.subr.mxu0 %v747
        %2075 = vmatpush1.xpose.msra.mxu0 %v746
        %2076 = vmatprep.subr.mxu0 %v763
        %2077 = vmatpush1.xpose.msra.mxu0 %v762
        %2078 = vmatprep.subr.mxu0 %v779
        %2079 = vmatpush1.xpose.msra.mxu0 %v778
        %2080 = vmatprep.subr.mxu0 %v795
        %2081 = vmatpush1.xpose.msra.mxu0 %v794
        %2082 = vmatprep.subr.mxu0 %v811
        %2083 = vmatpush1.xpose.msra.mxu0 %v810
        %2084 = vmatprep.subr.mxu0 %v827
        %2085 = vmatpush1.xpose.msra.mxu0 %v826
        %2086 = vmatprep.subr.mxu0 %v843
        %2087 = vmatpush1.xpose.msra.mxu0 %v842
        %2088 = vmatprep.subr.mxu0 %v859
        %2089 = vmatpush1.xpose.msra.mxu0 %v858
        %2090 = vmatprep.subr.mxu0 %v875
        %2091 = vmatpush1.xpose.msra.mxu0 %v874
        %2092 = vmatprep.subr.mxu0 %v891
        %2093 = vmatpush1.xpose.msra.mxu0 %v890
        %2094 = vmatprep.subr.mxu0 %v907
        %2095 = vmatpush1.xpose.msra.mxu0 %v906
        %2096 = vmatprep.subr.mxu0 %v923
        %2097 = vmatpush1.xpose.msra.mxu0 %v922
        %2098 = vmatprep.subr.mxu0 %v939
        %2099 = vmatpush1.xpose.msra.mxu0 %v938
        %2100 = vmatprep.subr.mxu0 %v955
        %2101 = vmatpush1.xpose.msra.mxu0 %v954
        %2102 = vmatprep.subr.mxu0 %v971
        %2103 = vmatpush1.xpose.msra.mxu0 %v970
        %2104 = vmatprep.subr.mxu0 %v987
        %2105 = vmatpush1.xpose.msra.mxu0 %v986
        %2106 = vmatprep.subr.mxu0 %v1003
        %2107 = vmatpush1.xpose.msra.mxu0 %v1002
        %2108 = vmatprep.subr.mxu0 %v1019
        %2109 = vmatpush1.xpose.msra.mxu0 %v1018
        %2110 = vmatprep.subr.mxu0 %v1035
        %2111 = vmatpush1.xpose.msra.mxu0 %v1034
        %2112 = vmatprep.subr.mxu0 %v1051
        %2113 = vmatpush1.xpose.msra.mxu0 %v1050
        %2114 = vmatprep.subr.mxu0 %v1067
        %2115 = vmatpush1.xpose.msra.mxu0 %v1066
        %2116 = vmatprep.subr.mxu0 %v1083
        %2117 = vmatpush1.xpose.msra.mxu0 %v1082
        %2118 = vmatprep.subr.mxu0 %v1099
        %2119 = vmatpush1.xpose.msra.mxu0 %v1098
        %2120 = vmatprep.subr.mxu0 %v1115
        %2121 = vmatpush1.xpose.msra.mxu0 %v1114
        %2122 = vmatprep.subr.mxu0 %v1131
        %2123 = vmatpush1.xpose.msra.mxu0 %v1130
        %2124 = vmatprep.subr.mxu0 %v1147
        %2125 = vmatpush1.xpose.msra.mxu0 %v1146
        %2126 = vmatprep.subr.mxu0 %v1163
        %2127 = vmatpush1.xpose.msra.mxu0 %v1162
        %2128 = vmatprep.subr.mxu0 %v1179
        %2129 = vmatpush1.xpose.msra.mxu0 %v1178
        %2130 = vmatprep.subr.mxu0 %v1195
        %2131 = vmatpush1.xpose.msra.mxu0 %v1194
        %2132 = vmatprep.subr.mxu0 %v1211
        %2133 = vmatpush1.xpose.msra.mxu0 %v1210
        %2134 = vmatprep.mubr.f32.mxu0 %v187
        %2135 = vmatmul.mubr.f32.gmra.mrb[0].mxu0 %v186
        %v2136 = vpop.f32.mrb[0].mxu0
        %v2137 = vadd.f32 %v2066, %v2136
        %v2138 = vpop.f32.mrb[0].mxu0
        %v2139 = vadd.f32 %v2068, %v2138
        %2140 = vdwg.mxu0
        %2141 = vmatprep.subr.mxu0 %v717
        %2142 = vmatpush1.xpose.msra.mxu0 %v716
        %2143 = vmatprep.subr.mxu0 %v733
        %2144 = vmatpush1.xpose.msra.mxu0 %v732
        %2145 = vmatprep.subr.mxu0 %v749
        %2146 = vmatpush1.xpose.msra.mxu0 %v748
        %2147 = vmatprep.subr.mxu0 %v765
        %2148 = vmatpush1.xpose.msra.mxu0 %v764
        %2149 = vmatprep.subr.mxu0 %v781
        %2150 = vmatpush1.xpose.msra.mxu0 %v780
        %2151 = vmatprep.subr.mxu0 %v797
        %2152 = vmatpush1.xpose.msra.mxu0 %v796
        %2153 = vmatprep.subr.mxu0 %v813
        %2154 = vmatpush1.xpose.msra.mxu0 %v812
        %2155 = vmatprep.subr.mxu0 %v829
        %2156 = vmatpush1.xpose.msra.mxu0 %v828
        %2157 = vmatprep.subr.mxu0 %v845
        %2158 = vmatpush1.xpose.msra.mxu0 %v844
        %2159 = vmatprep.subr.mxu0 %v861
        %2160 = vmatpush1.xpose.msra.mxu0 %v860
        %2161 = vmatprep.subr.mxu0 %v877
        %2162 = vmatpush1.xpose.msra.mxu0 %v876
        %2163 = vmatprep.subr.mxu0 %v893
        %2164 = vmatpush1.xpose.msra.mxu0 %v892
        %2165 = vmatprep.subr.mxu0 %v909
        %2166 = vmatpush1.xpose.msra.mxu0 %v908
        %2167 = vmatprep.subr.mxu0 %v925
        %2168 = vmatpush1.xpose.msra.mxu0 %v924
        %2169 = vmatprep.subr.mxu0 %v941
        %2170 = vmatpush1.xpose.msra.mxu0 %v940
        %2171 = vmatprep.subr.mxu0 %v957
        %2172 = vmatpush1.xpose.msra.mxu0 %v956
        %2173 = vmatprep.subr.mxu0 %v973
        %2174 = vmatpush1.xpose.msra.mxu0 %v972
        %2175 = vmatprep.subr.mxu0 %v989
        %2176 = vmatpush1.xpose.msra.mxu0 %v988
        %2177 = vmatprep.subr.mxu0 %v1005
        %2178 = vmatpush1.xpose.msra.mxu0 %v1004
        %2179 = vmatprep.subr.mxu0 %v1021
        %2180 = vmatpush1.xpose.msra.mxu0 %v1020
        %2181 = vmatprep.subr.mxu0 %v1037
        %2182 = vmatpush1.xpose.msra.mxu0 %v1036
        %2183 = vmatprep.subr.mxu0 %v1053
        %2184 = vmatpush1.xpose.msra.mxu0 %v1052
        %2185 = vmatprep.subr.mxu0 %v1069
        %2186 = vmatpush1.xpose.msra.mxu0 %v1068
        %2187 = vmatprep.subr.mxu0 %v1085
        %2188 = vmatpush1.xpose.msra.mxu0 %v1084
        %2189 = vmatprep.subr.mxu0 %v1101
        %2190 = vmatpush1.xpose.msra.mxu0 %v1100
        %2191 = vmatprep.subr.mxu0 %v1117
        %2192 = vmatpush1.xpose.msra.mxu0 %v1116
        %2193 = vmatprep.subr.mxu0 %v1133
        %2194 = vmatpush1.xpose.msra.mxu0 %v1132
        %2195 = vmatprep.subr.mxu0 %v1149
        %2196 = vmatpush1.xpose.msra.mxu0 %v1148
        %2197 = vmatprep.subr.mxu0 %v1165
        %2198 = vmatpush1.xpose.msra.mxu0 %v1164
        %2199 = vmatprep.subr.mxu0 %v1181
        %2200 = vmatpush1.xpose.msra.mxu0 %v1180
        %2201 = vmatprep.subr.mxu0 %v1197
        %2202 = vmatpush1.xpose.msra.mxu0 %v1196
        %2203 = vmatprep.subr.mxu0 %v1213
        %2204 = vmatpush1.xpose.msra.mxu0 %v1212
        %2205 = vmatprep.mubr.f32.mxu0 %v189
        %2206 = vmatmul.mubr.f32.gmra.mrb[0].mxu0 %v188
        %v2207 = vpop.f32.mrb[0].mxu0
        %v2208 = vadd.f32 %v2137, %v2207
        %v2209 = vpop.f32.mrb[0].mxu0
        %v2210 = vadd.f32 %v2139, %v2209
        %2211 = vdwg.mxu0
        %2212 = vmatprep.subr.mxu0 %v719
        %2213 = vmatpush1.xpose.msra.mxu0 %v718
        %2214 = vmatprep.subr.mxu0 %v735
        %2215 = vmatpush1.xpose.msra.mxu0 %v734
        %2216 = vmatprep.subr.mxu0 %v751
        %2217 = vmatpush1.xpose.msra.mxu0 %v750
        %2218 = vmatprep.subr.mxu0 %v767
        %2219 = vmatpush1.xpose.msra.mxu0 %v766
        %2220 = vmatprep.subr.mxu0 %v783
        %2221 = vmatpush1.xpose.msra.mxu0 %v782
        %2222 = vmatprep.subr.mxu0 %v799
        %2223 = vmatpush1.xpose.msra.mxu0 %v798
        %2224 = vmatprep.subr.mxu0 %v815
        %2225 = vmatpush1.xpose.msra.mxu0 %v814
        %2226 = vmatprep.subr.mxu0 %v831
        %2227 = vmatpush1.xpose.msra.mxu0 %v830
        %2228 = vmatprep.subr.mxu0 %v847
        %2229 = vmatpush1.xpose.msra.mxu0 %v846
        %2230 = vmatprep.subr.mxu0 %v863
        %2231 = vmatpush1.xpose.msra.mxu0 %v862
        %2232 = vmatprep.subr.mxu0 %v879
        %2233 = vmatpush1.xpose.msra.mxu0 %v878
        %2234 = vmatprep.subr.mxu0 %v895
        %2235 = vmatpush1.xpose.msra.mxu0 %v894
        %2236 = vmatprep.subr.mxu0 %v911
        %2237 = vmatpush1.xpose.msra.mxu0 %v910
        %2238 = vmatprep.subr.mxu0 %v927
        %2239 = vmatpush1.xpose.msra.mxu0 %v926
        %2240 = vmatprep.subr.mxu0 %v943
        %2241 = vmatpush1.xpose.msra.mxu0 %v942
        %2242 = vmatprep.subr.mxu0 %v959
        %2243 = vmatpush1.xpose.msra.mxu0 %v958
        %2244 = vmatprep.subr.mxu0 %v975
        %2245 = vmatpush1.xpose.msra.mxu0 %v974
        %2246 = vmatprep.subr.mxu0 %v991
        %2247 = vmatpush1.xpose.msra.mxu0 %v990
        %2248 = vmatprep.subr.mxu0 %v1007
        %2249 = vmatpush1.xpose.msra.mxu0 %v1006
        %2250 = vmatprep.subr.mxu0 %v1023
        %2251 = vmatpush1.xpose.msra.mxu0 %v1022
        %2252 = vmatprep.subr.mxu0 %v1039
        %2253 = vmatpush1.xpose.msra.mxu0 %v1038
        %2254 = vmatprep.subr.mxu0 %v1055
        %2255 = vmatpush1.xpose.msra.mxu0 %v1054
        %2256 = vmatprep.subr.mxu0 %v1071
        %2257 = vmatpush1.xpose.msra.mxu0 %v1070
        %2258 = vmatprep.subr.mxu0 %v1087
        %2259 = vmatpush1.xpose.msra.mxu0 %v1086
        %2260 = vmatprep.subr.mxu0 %v1103
        %2261 = vmatpush1.xpose.msra.mxu0 %v1102
        %2262 = vmatprep.subr.mxu0 %v1119
        %2263 = vmatpush1.xpose.msra.mxu0 %v1118
        %2264 = vmatprep.subr.mxu0 %v1135
        %2265 = vmatpush1.xpose.msra.mxu0 %v1134
        %2266 = vmatprep.subr.mxu0 %v1151
        %2267 = vmatpush1.xpose.msra.mxu0 %v1150
        %2268 = vmatprep.subr.mxu0 %v1167
        %2269 = vmatpush1.xpose.msra.mxu0 %v1166
        %2270 = vmatprep.subr.mxu0 %v1183
        %2271 = vmatpush1.xpose.msra.mxu0 %v1182
        %2272 = vmatprep.subr.mxu0 %v1199
        %2273 = vmatpush1.xpose.msra.mxu0 %v1198
        %2274 = vmatprep.subr.mxu0 %v1215
        %2275 = vmatpush1.xpose.msra.mxu0 %v1214
        %2276 = vmatprep.mubr.f32.mxu0 %v191
        %2277 = vmatmul.mubr.f32.gmra.mrb[0].mxu0 %v190
        %v2278 = vpop.f32.mrb[0].mxu0
        %v2279 = vadd.f32 %v2208, %v2278
        %v2280 = vpop.f32.mrb[0].mxu0
        %v2281 = vadd.f32 %v2210, %v2280
        %2282 = vdwg.mxu0
        %2283 = vmatprep.subr.mxu0 %v721
        %2284 = vmatpush1.xpose.msra.mxu0 %v720
        %2285 = vmatprep.subr.mxu0 %v737
        %2286 = vmatpush1.xpose.msra.mxu0 %v736
        %2287 = vmatprep.subr.mxu0 %v753
        %2288 = vmatpush1.xpose.msra.mxu0 %v752
        %2289 = vmatprep.subr.mxu0 %v769
        %2290 = vmatpush1.xpose.msra.mxu0 %v768
        %2291 = vmatprep.subr.mxu0 %v785
        %2292 = vmatpush1.xpose.msra.mxu0 %v784
        %2293 = vmatprep.subr.mxu0 %v801
        %2294 = vmatpush1.xpose.msra.mxu0 %v800
        %2295 = vmatprep.subr.mxu0 %v817
        %2296 = vmatpush1.xpose.msra.mxu0 %v816
        %2297 = vmatprep.subr.mxu0 %v833
        %2298 = vmatpush1.xpose.msra.mxu0 %v832
        %2299 = vmatprep.subr.mxu0 %v849
        %2300 = vmatpush1.xpose.msra.mxu0 %v848
        %2301 = vmatprep.subr.mxu0 %v865
        %2302 = vmatpush1.xpose.msra.mxu0 %v864
        %2303 = vmatprep.subr.mxu0 %v881
        %2304 = vmatpush1.xpose.msra.mxu0 %v880
        %2305 = vmatprep.subr.mxu0 %v897
        %2306 = vmatpush1.xpose.msra.mxu0 %v896
        %2307 = vmatprep.subr.mxu0 %v913
        %2308 = vmatpush1.xpose.msra.mxu0 %v912
        %2309 = vmatprep.subr.mxu0 %v929
        %2310 = vmatpush1.xpose.msra.mxu0 %v928
        %2311 = vmatprep.subr.mxu0 %v945
        %2312 = vmatpush1.xpose.msra.mxu0 %v944
        %2313 = vmatprep.subr.mxu0 %v961
        %2314 = vmatpush1.xpose.msra.mxu0 %v960
        %2315 = vmatprep.subr.mxu0 %v977
        %2316 = vmatpush1.xpose.msra.mxu0 %v976
        %2317 = vmatprep.subr.mxu0 %v993
        %2318 = vmatpush1.xpose.msra.mxu0 %v992
        %2319 = vmatprep.subr.mxu0 %v1009
        %2320 = vmatpush1.xpose.msra.mxu0 %v1008
        %2321 = vmatprep.subr.mxu0 %v1025
        %2322 = vmatpush1.xpose.msra.mxu0 %v1024
        %2323 = vmatprep.subr.mxu0 %v1041
        %2324 = vmatpush1.xpose.msra.mxu0 %v1040
        %2325 = vmatprep.subr.mxu0 %v1057
        %2326 = vmatpush1.xpose.msra.mxu0 %v1056
        %2327 = vmatprep.subr.mxu0 %v1073
        %2328 = vmatpush1.xpose.msra.mxu0 %v1072
        %2329 = vmatprep.subr.mxu0 %v1089
        %2330 = vmatpush1.xpose.msra.mxu0 %v1088
        %2331 = vmatprep.subr.mxu0 %v1105
        %2332 = vmatpush1.xpose.msra.mxu0 %v1104
        %2333 = vmatprep.subr.mxu0 %v1121
        %2334 = vmatpush1.xpose.msra.mxu0 %v1120
        %2335 = vmatprep.subr.mxu0 %v1137
        %2336 = vmatpush1.xpose.msra.mxu0 %v1136
        %2337 = vmatprep.subr.mxu0 %v1153
        %2338 = vmatpush1.xpose.msra.mxu0 %v1152
        %2339 = vmatprep.subr.mxu0 %v1169
        %2340 = vmatpush1.xpose.msra.mxu0 %v1168
        %2341 = vmatprep.subr.mxu0 %v1185
        %2342 = vmatpush1.xpose.msra.mxu0 %v1184
        %2343 = vmatprep.subr.mxu0 %v1201
        %2344 = vmatpush1.xpose.msra.mxu0 %v1200
        %2345 = vmatprep.subr.mxu0 %v1217
        %2346 = vmatpush1.xpose.msra.mxu0 %v1216
        %2347 = vmatprep.mubr.f32.mxu0 %v193
        %2348 = vmatmul.mubr.f32.gmra.mrb[0].mxu0 %v192
        %v2349 = vpop.f32.mrb[0].mxu0
        %v2350 = vadd.f32 %v2279, %v2349
        %v2351 = vpop.f32.mrb[0].mxu0
        %v2352 = vadd.f32 %v2281, %v2351
        %2353 = vdwg.mxu0
        %2354 = vst [vmem:[%s175] sm:$0xff] %v1782
        %2355 = vst [vmem:[%s175 + $0x8] sm:$0xff] %v1784
        %2356 = vst [vmem:[%s175 + $0x10] sm:$0xff] %v2350
        %2357 = vst [vmem:[%s175 + $0x18] sm:$0xff] %v2352
        %s2358 = sand.u32 %s75, 1
        %s2359 = scalar_lea.sflag [#allocation4], %s2358
        %s2360 = sand.u32 %s75, 1
        %s2361 = smul.addr %s2360, 32
        %s2362 = scalar_lea.vmem [#allocation7], %s2361
        // Predicated region
        $region37: #{pallas_linear.1} parent=27 // pred_check
          %p2363 = pneg %p85
        $region38: #{pallas_linear.1} parent=27 // pred_check_branch
          %2365 = sbr.rel (%p2363) target = $region40
        $region39: #{pallas_linear.1} parent=27 // pred_region
          %s2366 = smul.u32 4, %s20
          %s2368 = ssub.s32 512, 512
          %2369 = vsyncadd %s2359, %s2368
          %s2370 = smul.addr %s2366, 128
          %s2371 = scalar_lea.hbm %s2, %s2370
          %s2373 = sshll.u32 %s2362, 4
          %s2374 = int_to_ptr.vmem [resolvable:$true] %s2373
          %2376 = dma.vmem_to_hbm [thread:$0]  %s2374, 512, %s2371, %s2359
        $region40: #{pallas_linear.1} parent=27 // pred_fallthru
          _
      $region28: #{pallas_linear.1} parent=5 // pred_fallthru
        _
      %p2377 = scmp.le.s32.totalorder 2, %s15
      // Predicated region
      $region41: #{pallas_linear.1} parent=5 // pred_check
        %p2378 = pneg %p2377
      $region42: #{pallas_linear.1} parent=5 // pred_check_branch
        %2380 = sbr.rel (%p2378) target = $region44
      $region43: #{pallas_linear.1} parent=5 // pred_region
        %s2381 = ssub.s32 %s15, 2
        // Predicated region
        $region45: #{pallas_linear.1} parent=43 // pred_check
          %p2382 = pneg %p91
        $region46: #{pallas_linear.1} parent=43 // pred_check_branch
          %2384 = sbr.rel (%p2382) target = $region48
        $region47: #{pallas_linear.1} parent=43 // pred_region
          %s2385 = sand.u32 %s76, 1
          %s2386 = scalar_lea.sflag [#allocation4], %s2385
          %s2387 = sand.u32 %s76, 1
          %s2388 = smul.addr %s2387, 32
          %s2389 = scalar_lea.vmem [#allocation7], %s2388
          %2390 = dma.done %s2386, 512
        $region48: #{pallas_linear.1} parent=43 // pred_fallthru
          _
      $region44: #{pallas_linear.1} parent=5 // pred_fallthru
        _
    $region6: #{pallas_linear.1} parent=1 // loop_footer
      %s19 = sadd.s32 1, %s15
    $region7: #{pallas_linear.1} parent=1 // loop_footer_branch
      %14 = sbr.rel target = $region3
    $region8: #{pallas_linear.1} parent=1 // loop_exit
      _
    %2391 = vsyncpa [#allocation3], 1
    %s2392 = scalar_lea.sflag [#allocation3], 1
    %2393 = vsyncpa %s2392, 1
    %2394 = vsyncpa [#allocation6], 1
    %s2395 = scalar_lea.sflag [#allocation6], 1
    %2396 = vsyncpa %s2395, 1
    %2397 = vsyncpa [#allocation4], 1
    %s2398 = scalar_lea.sflag [#allocation4], 1
    %2399 = vsyncpa %s2398, 1

</llo_original>
